<compile_context>
chip_gen: v6e
topology: v6e:2x2x1
jax: 0.10.0
libtpu: 0.0.40
codegen_flags: <defaults>
</compile_context>

<pallas_src>
import jax
import jax.numpy as jnp
from jax import lax
from jax.experimental import pallas as pl
from jax.experimental.pallas import tpu as pltpu

# ---- constants from CustomTransform.__init__ --------------------------------
NUM_CLIPS = 10
CLIP_LEN = 100
THRESHOLD = 0.01
W = 960.0
H = 576.0
NUM_PERSON = 2          # M
NC = 10
SEQ_NUM = 1000 // 10    # 100
V = 17
C = 3
VC = V * C              # 51, lane axis inside the kernel
L = NUM_CLIPS * CLIP_LEN


def _clip_kernel(inds_ref, chan_ref, kp_ref, sb_ref, out_ref):
    """One grid step == one clip.

    inds_ref : (1, CLIP_LEN, 1) int32   frame indices of this clip
    chan_ref : (1, 1, VC)       int32   channel id per lane: 0,1,2,0,1,2,...
    kp_ref   : (P, T, VC)       f32     raw keypoints, (V,C) flattened on lanes
    sb_ref   : (P, T, VC)       f32     per-joint score broadcast to its 3 lanes
    out_ref  : (1, M, SEQ_NUM, VC) f32  this clip's output block
    """
    P = kp_ref.shape[0]
    T = kp_ref.shape[1]

    # ---- normalize + mask the T source frames (per-lane affine + one select) ----
    kp = kp_ref[...]                                   # (P, T, VC)
    sb = sb_ref[...]                                   # (P, T, VC)
    chan = chan_ref[...]                               # (1, 1, VC)
    scale = jnp.where(chan == 0, 2.0 / W, jnp.where(chan == 1, 2.0 / H, 1.0))
    bias = jnp.where(chan == 2, 0.0, -1.0)
    # score channel always passes through; x/y zeroed when joint score <= thr
    keep = jnp.logical_or(sb > THRESHOLD, chan == 2)
    norm = jnp.where(keep, kp * scale + bias, 0.0)     # (P, T, VC)

    # ---- exact gather of CLIP_LEN frames via one-hot matmul on the MXU ----------
    idx = inds_ref[0]                                  # (CLIP_LEN, 1) int32
    t_iota = lax.broadcasted_iota(jnp.int32, (CLIP_LEN, T), 1)
    onehot = (idx == t_iota).astype(jnp.float32)       # (CLIP_LEN, T), exact 0/1

    for p in range(NUM_PERSON):                        # static loop (M == 2)
        if p < P:
            out_ref[0, p, :, :] = jnp.dot(
                onehot, norm[p],
                preferred_element_type=jnp.float32,
                precision=lax.Precision.HIGHEST)       # exact one-hot selection
        else:
            # padded person rows (torch.cat with zeros)
            out_ref[0, p, :, :] = jnp.zeros((SEQ_NUM, VC), jnp.float32)


def custom_transform(keypoint, key):
    """keypoint: (P, T, V, C) float32 ; returns ((1, nc, M, seqNum, V, C), inds)."""
    P, T, Vv, Cc = keypoint.shape
    assert Vv == V and Cc == C
    assert 1 <= P <= NUM_PERSON, "module supports at most num_person=2 detected persons"

    kp32 = keypoint.astype(jnp.float32)
    kp_flat = kp32.reshape(P, T, VC)                           # lane-dense layout
    score_b = jnp.repeat(kp32[..., 2], C, axis=-1)             # (P, T, VC): s per joint on its 3 lanes
    chan = jnp.tile(jnp.arange(C, dtype=jnp.int32), V).reshape(1, 1, VC)

    # random clip starts (torch.randint equivalent, deterministic via PRNGKey);
    # transitional is all-False in the reference module -> coeff == 0 -> inds unchanged
    starts = jax.random.randint(key, (NUM_CLIPS,), 0, T, dtype=jnp.int32)
    inds2d = (starts[:, None] +
              jnp.arange(CLIP_LEN, dtype=jnp.int32)[None, :]) % T      # (NC, CLIP_LEN)
    inds_col = inds2d.reshape(NUM_CLIPS, CLIP_LEN, 1)

    gathered = pl.pallas_call(
        _clip_kernel,
        out_shape=jax.ShapeDtypeStruct((NC, NUM_PERSON, SEQ_NUM, VC), jnp.float32),
        grid_spec=pltpu.PrefetchScalarGridSpec(
            num_scalar_prefetch=0,
            grid=(NUM_CLIPS,),
            in_specs=[
                pl.BlockSpec((1, CLIP_LEN, 1), lambda i: (i, 0, 0)),   # this clip's indices
                pl.BlockSpec((1, 1, VC), lambda i: (0, 0, 0)),         # channel ids (const)
                pl.BlockSpec((P, T, VC), lambda i: (0, 0, 0)),         # whole keypoint array (~10 KB)
                pl.BlockSpec((P, T, VC), lambda i: (0, 0, 0)),         # whole score-broadcast array
            ],
            out_specs=pl.BlockSpec((1, NUM_PERSON, SEQ_NUM, VC),
                                   lambda i: (i, 0, 0, 0)),
        ),
        compiler_params=pltpu.CompilerParams(
            dimension_semantics=("parallel",)),        # clips independent -> 2 TCs on v7x
    )(inds_col, chan, kp_flat, score_b)

    # kernel already emits the (nc, M, seqNum, ...) ordering; this reshape is a
    # contiguous (free) split of the last dim + leading unsqueeze.
    out = gathered.reshape(1, NC, NUM_PERSON, SEQ_NUM, V, C)
    return out, inds2d.reshape(-1)


custom_transform_jit = jax.jit(custom_transform)


def _reference(keypoint, inds):
    """Pure-JAX replica of the PyTorch forward (given the same clip indices)."""
    x = keypoint[..., 0]
    y = keypoint[..., 1]
    s = keypoint[..., 2]
    keep = s > THRESHOLD
    x = jnp.where(keep, (x - W / 2.0) / (W / 2.0), 0.0)
    y = jnp.where(keep, (y - H / 2.0) / (H / 2.0), 0.0)
    kp = jnp.stack([x, y, s], axis=-1).astype(jnp.float32)
    kp = kp[:, inds]
    pad = jnp.zeros((NUM_PERSON - kp.shape[0],) + kp.shape[1:], kp.dtype)
    kp = jnp.concatenate([kp, pad], axis=0)
    kp = kp.reshape(NUM_PERSON, NC, SEQ_NUM, V, C)
    return jnp.transpose(kp, (1, 0, 2, 3, 4))[None, ...]


if __name__ == "__main__":
    key = jax.random.PRNGKey(0)
    k_x, k_y, k_s, k_clip, k_clip2 = jax.random.split(key, 5)

    T = 48
    for P, kc in ((1, k_clip), (2, k_clip2)):   # exercise both the real-person and zero-pad paths
        kx, ky, ks = jax.random.split(jax.random.fold_in(key, P), 3)
        x = jax.random.uniform(kx, (P, T, V, 1), jnp.float32, 0.0, W)
        y = jax.random.uniform(ky, (P, T, V, 1), jnp.float32, 0.0, H)
        s = jax.random.uniform(ks, (P, T, V, 1), jnp.float32, 0.0, 1.0)
        keypoint = jnp.concatenate([x, y, s], axis=-1)          # (P, 48, 17, 3)

        out, inds = custom_transform_jit(keypoint, kc)
        out = jax.block_until_ready(out)

        assert out.shape == (1, NC, NUM_PERSON, SEQ_NUM, V, C), out.shape
        ref = _reference(keypoint, inds)
        err = float(jnp.max(jnp.abs(out - ref)))
        assert err < 1e-5, err

    print("KERNEL_OK")
</pallas_src>

<mosaic_0001>
module attributes {stable_mosaic.version = 11 : i64} {
  func.func @_clip_kernel(%arg0: i32, %arg1: memref<1x100x1xi32, #tpu.memory_space<vmem>>, %arg2: memref<1x1x51xi32, #tpu.memory_space<vmem>>, %arg3: memref<1x48x51xf32, #tpu.memory_space<vmem>>, %arg4: memref<1x48x51xf32, #tpu.memory_space<vmem>>, %arg5: memref<1x2x100x51xf32, #tpu.memory_space<vmem>>) attributes {dimension_semantics = [#tpu.dimension_semantics<parallel>], iteration_bounds = array<i64: 10>, scalar_prefetch = 0 : i64, scratch_operands = 0 : i64, tpu.core_type = #tpu.core_type<tc>, window_params = [{transform_indices = @transform_0, window_bounds = array<i64: 1, 100, 1>}, {pipeline_mode = #tpu.pipeline_mode<synchronous>, transform_indices = @transform_1, window_bounds = array<i64: 1, 1, 51>}, {pipeline_mode = #tpu.pipeline_mode<synchronous>, transform_indices = @transform_2, window_bounds = array<i64: 1, 48, 51>}, {pipeline_mode = #tpu.pipeline_mode<synchronous>, transform_indices = @transform_3, window_bounds = array<i64: 1, 48, 51>}, {transform_indices = @transform_4, window_bounds = array<i64: 1, 2, 100, 51>}]} {
    %c0 = arith.constant 0 : index
    %c0_0 = arith.constant 0 : index
    %c0_1 = arith.constant 0 : index
    %0 = vector.load %arg3[%c0, %c0_0, %c0_1] : memref<1x48x51xf32, #tpu.memory_space<vmem>>, vector<1x48x51xf32>
    %c0_2 = arith.constant 0 : index
    %c0_3 = arith.constant 0 : index
    %c0_4 = arith.constant 0 : index
    %1 = vector.load %arg4[%c0_2, %c0_3, %c0_4] : memref<1x48x51xf32, #tpu.memory_space<vmem>>, vector<1x48x51xf32>
    %c0_5 = arith.constant 0 : index
    %c0_6 = arith.constant 0 : index
    %c0_7 = arith.constant 0 : index
    %2 = vector.load %arg2[%c0_5, %c0_6, %c0_7] : memref<1x1x51xi32, #tpu.memory_space<vmem>>, vector<1x1x51xi32>
    %c0_i32 = arith.constant 0 : i32
    %3 = vector.broadcast %c0_i32 : i32 to vector<1x1x51xi32>
    %4 = arith.cmpi eq, %2, %3 : vector<1x1x51xi32>
    %c1_i32 = arith.constant 1 : i32
    %5 = vector.broadcast %c1_i32 : i32 to vector<1x1x51xi32>
    %6 = arith.cmpi eq, %2, %5 : vector<1x1x51xi32>
    %cst = arith.constant 0.00347222225 : f32
    %cst_8 = arith.constant 1.000000e+00 : f32
    %7 = vector.broadcast %cst : f32 to vector<1x1x51xf32>
    %8 = vector.broadcast %cst_8 : f32 to vector<1x1x51xf32>
    %9 = arith.select %6, %7, %8 : vector<1x1x51xi1>, vector<1x1x51xf32>
    %cst_9 = arith.constant 0.00208333344 : f32
    %10 = vector.broadcast %cst_9 : f32 to vector<1x1x51xf32>
    %11 = arith.select %4, %10, %9 : vector<1x1x51xi1>, vector<1x1x51xf32>
    %c2_i32 = arith.constant 2 : i32
    %12 = vector.broadcast %c2_i32 : i32 to vector<1x1x51xi32>
    %13 = arith.cmpi eq, %2, %12 : vector<1x1x51xi32>
    %cst_10 = arith.constant 0.000000e+00 : f32
    %cst_11 = arith.constant -1.000000e+00 : f32
    %14 = vector.broadcast %cst_10 : f32 to vector<1x1x51xf32>
    %15 = vector.broadcast %cst_11 : f32 to vector<1x1x51xf32>
    %16 = arith.select %13, %14, %15 : vector<1x1x51xi1>, vector<1x1x51xf32>
    %cst_12 = arith.constant 0.00999999977 : f32
    %17 = vector.broadcast %cst_12 : f32 to vector<1x48x51xf32>
    %18 = arith.cmpf ogt, %1, %17 : vector<1x48x51xf32>
    %c2_i32_13 = arith.constant 2 : i32
    %19 = vector.broadcast %c2_i32_13 : i32 to vector<1x1x51xi32>
    %20 = arith.cmpi eq, %2, %19 : vector<1x1x51xi32>
    %21 = vector.broadcast %20 : vector<1x1x51xi1> to vector<1x48x51xi1>
    %22 = arith.ori %18, %21 : vector<1x48x51xi1>
    %23 = vector.broadcast %11 : vector<1x1x51xf32> to vector<1x48x51xf32>
    %24 = arith.mulf %0, %23 : vector<1x48x51xf32>
    %25 = vector.broadcast %16 : vector<1x1x51xf32> to vector<1x48x51xf32>
    %26 = arith.addf %24, %25 : vector<1x48x51xf32>
    %cst_14 = arith.constant 0.000000e+00 : f32
    %27 = vector.broadcast %cst_14 : f32 to vector<1x48x51xf32>
    %28 = arith.select %22, %26, %27 : vector<1x48x51xi1>, vector<1x48x51xf32>
    %c0_15 = arith.constant 0 : index
    %c0_16 = arith.constant 0 : index
    %c0_17 = arith.constant 0 : index
    %29 = vector.load %arg1[%c0_15, %c0_16, %c0_17] : memref<1x100x1xi32, #tpu.memory_space<vmem>>, vector<1x100x1xi32>
    %30 = vector.shape_cast %29 : vector<1x100x1xi32> to vector<100x1xi32>
    %31 = tpu.iota {dimensions = array<i32: 1>} : vector<100x48xi32>
    %32 = vector.broadcast %30 : vector<100x1xi32> to vector<100x48xi32>
    %33 = arith.cmpi eq, %32, %31 : vector<100x48xi32>
    %34 = arith.extui %33 : vector<100x48xi1> to vector<100x48xi32>
    %35 = arith.sitofp %34 : vector<100x48xi32> to vector<100x48xf32>
    %36 = vector.shape_cast %28 : vector<1x48x51xf32> to vector<48x51xf32>
    %cst_18 = arith.constant dense<0.000000e+00> : vector<100x51xf32>
    %37 = tpu.matmul %35, %36, %cst_18 {dimension_numbers = #tpu.dot_dimension_numbers<[1], [0], [0], [1], [0, 0, 1, 1], [], []>, precision = #tpu.contract_precision<fp32>} : vector<100x48xf32>, vector<48x51xf32>, vector<100x51xf32> -> vector<100x51xf32>
    %c0_19 = arith.constant 0 : index
    %c0_20 = arith.constant 0 : index
    %c0_21 = arith.constant 0 : index
    %c0_22 = arith.constant 0 : index
    %38 = vector.load %arg5[%c0_19, %c0_20, %c0_21, %c0_22] : memref<1x2x100x51xf32, #tpu.memory_space<vmem>>, vector<1x1x100x51xf32>
    %39 = vector.shape_cast %38 : vector<1x1x100x51xf32> to vector<100x51xf32>
    %40 = vector.shape_cast %37 : vector<100x51xf32> to vector<1x1x100x51xf32>
    tpu.vector_store %arg5[%c0_19, %c0_20, %c0_21, %c0_22], %40 {strides = array<i32>} : memref<1x2x100x51xf32, #tpu.memory_space<vmem>>, vector<1x1x100x51xf32>,
    %cst_23 = arith.constant 0.000000e+00 : f32
    %41 = vector.broadcast %cst_23 : f32 to vector<100x51xf32>
    %c0_24 = arith.constant 0 : index
    %c1 = arith.constant 1 : index
    %c0_25 = arith.constant 0 : index
    %c0_26 = arith.constant 0 : index
    %42 = vector.load %arg5[%c0_24, %c1, %c0_25, %c0_26] : memref<1x2x100x51xf32, #tpu.memory_space<vmem>>, vector<1x1x100x51xf32>
    %43 = vector.shape_cast %42 : vector<1x1x100x51xf32> to vector<100x51xf32>
    %44 = vector.shape_cast %41 : vector<100x51xf32> to vector<1x1x100x51xf32>
    tpu.vector_store %arg5[%c0_24, %c1, %c0_25, %c0_26], %44 {strides = array<i32>} : memref<1x2x100x51xf32, #tpu.memory_space<vmem>>, vector<1x1x100x51xf32>,
    return
  }
  func.func @transform_0(%arg0: i32) -> (i32, i32, i32) {
    %c0_i32 = arith.constant 0 : i32
    %c0_i32_0 = arith.constant 0 : i32
    %c0_i32_1 = arith.constant 0 : i32
    return %arg0, %c0_i32, %c0_i32_0 : i32, i32, i32
  }
  func.func @transform_1(%arg0: i32) -> (i32, i32, i32) {
    %c0_i32 = arith.constant 0 : i32
    %c0_i32_0 = arith.constant 0 : i32
    %c0_i32_1 = arith.constant 0 : i32
    %c0_i32_2 = arith.constant 0 : i32
    return %c0_i32, %c0_i32_0, %c0_i32_1 : i32, i32, i32
  }
  func.func @transform_2(%arg0: i32) -> (i32, i32, i32) {
    %c0_i32 = arith.constant 0 : i32
    %c0_i32_0 = arith.constant 0 : i32
    %c0_i32_1 = arith.constant 0 : i32
    %c0_i32_2 = arith.constant 0 : i32
    return %c0_i32, %c0_i32_0, %c0_i32_1 : i32, i32, i32
  }
  func.func @transform_3(%arg0: i32) -> (i32, i32, i32) {
    %c0_i32 = arith.constant 0 : i32
    %c0_i32_0 = arith.constant 0 : i32
    %c0_i32_1 = arith.constant 0 : i32
    %c0_i32_2 = arith.constant 0 : i32
    return %c0_i32, %c0_i32_0, %c0_i32_1 : i32, i32, i32
  }
  func.func @transform_4(%arg0: i32) -> (i32, i32, i32, i32) {
    %c0_i32 = arith.constant 0 : i32
    %c0_i32_0 = arith.constant 0 : i32
    %c0_i32_1 = arith.constant 0 : i32
    %c0_i32_2 = arith.constant 0 : i32
    return %arg0, %c0_i32, %c0_i32_0, %c0_i32_1 : i32, i32, i32, i32
  }
}

</mosaic_0001>

<llo_original>
// kernel: tile.9
$region0: #{tile.9}
  %s0 = inlined_call_operand.vmem [shape: s32[17,3], index: 0, kind: input, shape index: {}]
  %s1 = inlined_call_operand.vmem [shape: s32[1,1,51], index: 1, kind: output, shape index: {}]
  $region1: #{tile.9} parent=0
    #allocation0 [shape = 'u8[4096]{0}', space=vmem, size = 0x1000, scoped, tag = 'scoped mem for output reshape']
    %v2 = vld [vmem:[%s0] sm:$0x1]
    %vm3 = vcmask 23552
    %4 = vst.msk [vmem:[#allocation0] sm:$0x1] %vm3, %v2
    %s5 = scalar_lea.vmem %s0, 16
    %v6 = vld [vmem:[%s5] sm:$0x1]
    %7 = vrot.lane.b32.xlu0 %v6, 48
    %v8 = vpop.permute.xlu0 %7
    %vm9 = vcmask 417152
    %10 = vst.msk [vmem:[#allocation0] sm:$0x1] %vm9, %v8
    %s11 = scalar_lea.vmem %s0, 15
    %v12 = vld [vmem:[%s11] sm:$0x1]
    %13 = vrot.lane.b32.xlu0 %v12, 45
    %v14 = vpop.permute.xlu0 %13
    %vm15 = vcmask 392552
    %16 = vst.msk [vmem:[#allocation0] sm:$0x1] %vm15, %v14
    %s17 = scalar_lea.vmem %s0, 14
    %v18 = vld [vmem:[%s17] sm:$0x1]
    %19 = vrot.lane.b32.xlu0 %v18, 42
    %v20 = vpop.permute.xlu0 %19
    %vm21 = vcmask 367952
    %22 = vst.msk [vmem:[#allocation0] sm:$0x1] %vm21, %v20
    %s23 = scalar_lea.vmem %s0, 13
    %v24 = vld [vmem:[%s23] sm:$0x1]
    %25 = vrot.lane.b32.xlu0 %v24, 39
    %v26 = vpop.permute.xlu0 %25
    %vm27 = vcmask 343352
    %28 = vst.msk [vmem:[#allocation0] sm:$0x1] %vm27, %v26
    %s29 = scalar_lea.vmem %s0, 12
    %v30 = vld [vmem:[%s29] sm:$0x1]
    %31 = vrot.lane.b32.xlu0 %v30, 36
    %v32 = vpop.permute.xlu0 %31
    %vm33 = vcmask 318752
    %34 = vst.msk [vmem:[#allocation0] sm:$0x1] %vm33, %v32
    %s35 = scalar_lea.vmem %s0, 11
    %v36 = vld [vmem:[%s35] sm:$0x1]
    %37 = vrot.lane.b32.xlu0 %v36, 33
    %v38 = vpop.permute.xlu0 %37
    %vm39 = vcmask 294152
    %40 = vst.msk [vmem:[#allocation0] sm:$0x1] %vm39, %v38
    %s41 = scalar_lea.vmem %s0, 10
    %v42 = vld [vmem:[%s41] sm:$0x1]
    %43 = vrot.lane.b32.xlu0 %v42, 30
    %v44 = vpop.permute.xlu0 %43
    %vm45 = vcmask 269552
    %46 = vst.msk [vmem:[#allocation0] sm:$0x1] %vm45, %v44
    %s47 = scalar_lea.vmem %s0, 9
    %v48 = vld [vmem:[%s47] sm:$0x1]
    %49 = vrot.lane.b32.xlu0 %v48, 27
    %v50 = vpop.permute.xlu0 %49
    %vm51 = vcmask 244952
    %52 = vst.msk [vmem:[#allocation0] sm:$0x1] %vm51, %v50
    %s53 = scalar_lea.vmem %s0, 8
    %v54 = vld [vmem:[%s53] sm:$0x1]
    %55 = vrot.lane.b32.xlu0 %v54, 24
    %v56 = vpop.permute.xlu0 %55
    %vm57 = vcmask 220352
    %58 = vst.msk [vmem:[#allocation0] sm:$0x1] %vm57, %v56
    %s59 = scalar_lea.vmem %s0, 7
    %v60 = vld [vmem:[%s59] sm:$0x1]
    %61 = vrot.lane.b32.xlu0 %v60, 21
    %v62 = vpop.permute.xlu0 %61
    %vm63 = vcmask 195752
    %64 = vst.msk [vmem:[#allocation0] sm:$0x1] %vm63, %v62
    %s65 = scalar_lea.vmem %s0, 6
    %v66 = vld [vmem:[%s65] sm:$0x1]
    %67 = vrot.lane.b32.xlu0 %v66, 18
    %v68 = vpop.permute.xlu0 %67
    %vm69 = vcmask 171152
    %70 = vst.msk [vmem:[#allocation0] sm:$0x1] %vm69, %v68
    %s71 = scalar_lea.vmem %s0, 5
    %v72 = vld [vmem:[%s71] sm:$0x1]
    %73 = vrot.lane.b32.xlu0 %v72, 15
    %v74 = vpop.permute.xlu0 %73
    %vm75 = vcmask 146552
    %76 = vst.msk [vmem:[#allocation0] sm:$0x1] %vm75, %v74
    %s77 = scalar_lea.vmem %s0, 4
    %v78 = vld [vmem:[%s77] sm:$0x1]
    %79 = vrot.lane.b32.xlu0 %v78, 12
    %v80 = vpop.permute.xlu0 %79
    %vm81 = vcmask 121952
    %82 = vst.msk [vmem:[#allocation0] sm:$0x1] %vm81, %v80
    %s83 = scalar_lea.vmem %s0, 3
    %v84 = vld [vmem:[%s83] sm:$0x1]
    %85 = vrot.lane.b32.xlu0 %v84, 9
    %v86 = vpop.permute.xlu0 %85
    %vm87 = vcmask 97352
    %88 = vst.msk [vmem:[#allocation0] sm:$0x1] %vm87, %v86
    %s89 = scalar_lea.vmem %s0, 2
    %v90 = vld [vmem:[%s89] sm:$0x1]
    %91 = vrot.lane.b32.xlu0 %v90, 6
    %v92 = vpop.permute.xlu0 %91
    %vm93 = vcmask 72752
    %94 = vst.msk [vmem:[#allocation0] sm:$0x1] %vm93, %v92
    %s95 = scalar_lea.vmem %s0, 1
    %v96 = vld [vmem:[%s95] sm:$0x1]
    %97 = vrot.lane.b32.xlu0 %v96, 3
    %v98 = vpop.permute.xlu0 %97
    %vm99 = vcmask 48152
    %100 = vst.msk [vmem:[#allocation0] sm:$0x1] %vm99, %v98
    %s102 = sshll.u32 1, 1
    %s103 = ssub.s32 %s102, 1
    %v105 = vld [vmem:[#allocation0] sm:%s103]
    %s106 = sshll.u32 1, 1
    %s107 = ssub.s32 %s106, 1
    %108 = vst [vmem:[%s1] sm:%s107] %v105

// kernel: custom_transform.1
$region0: #{custom_transform.1}
  #allocation0 [shape = 'u32[]', space=smem, size = 0x4, offset = 0x4, fixed_abs, tag = 'smem constant byte address 0x4 - core index']
  #allocation1 [shape = 'u32[144,128]{1,0:T(1,128)}', space=vmem, size = 0x12000, scoped, tag = 'internal scratch']
  %s0 = inlined_call_operand.vmem [shape: s32[10,100,1], index: 0, kind: input, shape index: {}]
  %s1 = inlined_call_operand.vmem [shape: s32[1,1,51], index: 1, kind: input, shape index: {}]
  %s2 = inlined_call_operand.vmem [shape: f32[1,48,51], index: 2, kind: input, shape index: {}]
  %s3 = inlined_call_operand.vmem [shape: f32[1,48,51], index: 3, kind: input, shape index: {}]
  %s4 = inlined_call_operand.vmem [shape: f32[10,2,100,51], index: 4, kind: output, shape index: {}]
  %s5 = sld [smem:[#allocation0]]
  $region49: #{custom_transform.1} parent=0
    _
  %s7 = ssub.s32 1, %s5
  %s8 = scalar_select 0, %s7, %s5
  loop: start=0, step=1, limit=12
  $region2: #{custom_transform.1} parent=0 // loop_pre_header
    _
  $region3: #{custom_transform.1} parent=0 // loop_header
    %s10 = sphi 0, %s14
    %p11 = scmp.ge.s32.totalorder %s10, 12
    %s20 = sphi 0, %s22
    %s23 = sphi 0, %s20
    %s24 = sphi 0, %s23
    %s40 = sphi 0, %s24
    %s44 = sphi 0, %s44
    %s46 = sphi 0, %s44
    %s47 = sphi 0, %s46
    %s61 = sphi 0, %s47
    %s65 = sphi 0, %s65
    %s67 = sphi 0, %s65
    %s68 = sphi 0, %s67
    %s82 = sphi 0, %s68
    %s86 = sphi 0, %s86
    %s88 = sphi 0, %s86
    %s89 = sphi 0, %s88
    %s103 = sphi 0, %s89
    %s109 = sphi 0, %s111
    %s112 = sphi 0, %s109
    %s113 = sphi 0, %s112
    %s129 = sphi 0, %s113
  $region4: #{custom_transform.1} parent=0 // loop_header_branch
    %13 = sbr.rel (%p11) target = $region8
  $region5: #{custom_transform.1} parent=0 // loop_body
    %s15 = ssub.s32 %s10, 1
    %s16 = ssub.s32 %s10, 2
    %s17 = sadd.s32 %s10, 1
    %s18 = ssub.s32 %s10, %s17
    %p19 = scmp.eq.s32.totalorder %s18, 0
    %s21 = sadd.s32 %s20, 1
    %s22 = scalar_select %p19, %s20, %s21
    %p25 = pneg %p19
    %p26 = scmp.eq.s32.totalorder %s10, 9
    %p27 = por %p25, %p26
    %p28 = scmp.ne.s32.totalorder %s20, %s23
    %p29 = scmp.eq.s32.totalorder %s10, 0
    %p30 = por %p28, %p29
    %p31 = scmp.ne.s32.totalorder %s20, %s23
    %p32 = scmp.eq.s32.totalorder %s15, 9
    %p33 = por %p31, %p32
    %p34 = scmp.ne.s32.totalorder %s23, %s24
    %p35 = scmp.eq.s32.totalorder %s15, 0
    %p36 = por %p34, %p35
    %p37 = scmp.ne.s32.totalorder %s23, %s24
    %p38 = scmp.eq.s32.totalorder %s16, 9
    %p39 = por %p37, %p38
    %p41 = scmp.ne.s32.totalorder %s24, %s40
    %p42 = scmp.eq.s32.totalorder %s16, 0
    %p43 = por %p41, %p42
    %s45 = sadd.s32 %s44, 1
    %p48 = scmp.eq.s32.totalorder %s10, 9
    %p49 = scmp.ne.s32.totalorder %s44, %s46
    %p50 = scmp.eq.s32.totalorder %s10, 0
    %p51 = por %p49, %p50
    %p52 = scmp.ne.s32.totalorder %s44, %s46
    %p53 = scmp.eq.s32.totalorder %s15, 9
    %p54 = por %p52, %p53
    %p55 = scmp.ne.s32.totalorder %s46, %s47
    %p56 = scmp.eq.s32.totalorder %s15, 0
    %p57 = por %p55, %p56
    %p58 = scmp.ne.s32.totalorder %s46, %s47
    %p59 = scmp.eq.s32.totalorder %s16, 9
    %p60 = por %p58, %p59
    %p62 = scmp.ne.s32.totalorder %s47, %s61
    %p63 = scmp.eq.s32.totalorder %s16, 0
    %p64 = por %p62, %p63
    %s66 = sadd.s32 %s65, 1
    %p69 = scmp.eq.s32.totalorder %s10, 9
    %p70 = scmp.ne.s32.totalorder %s65, %s67
    %p71 = scmp.eq.s32.totalorder %s10, 0
    %p72 = por %p70, %p71
    %p73 = scmp.ne.s32.totalorder %s65, %s67
    %p74 = scmp.eq.s32.totalorder %s15, 9
    %p75 = por %p73, %p74
    %p76 = scmp.ne.s32.totalorder %s67, %s68
    %p77 = scmp.eq.s32.totalorder %s15, 0
    %p78 = por %p76, %p77
    %p79 = scmp.ne.s32.totalorder %s67, %s68
    %p80 = scmp.eq.s32.totalorder %s16, 9
    %p81 = por %p79, %p80
    %p83 = scmp.ne.s32.totalorder %s68, %s82
    %p84 = scmp.eq.s32.totalorder %s16, 0
    %p85 = por %p83, %p84
    %s87 = sadd.s32 %s86, 1
    %p90 = scmp.eq.s32.totalorder %s10, 9
    %p91 = scmp.ne.s32.totalorder %s86, %s88
    %p92 = scmp.eq.s32.totalorder %s10, 0
    %p93 = por %p91, %p92
    %p94 = scmp.ne.s32.totalorder %s86, %s88
    %p95 = scmp.eq.s32.totalorder %s15, 9
    %p96 = por %p94, %p95
    %p97 = scmp.ne.s32.totalorder %s88, %s89
    %p98 = scmp.eq.s32.totalorder %s15, 0
    %p99 = por %p97, %p98
    %p100 = scmp.ne.s32.totalorder %s88, %s89
    %p101 = scmp.eq.s32.totalorder %s16, 9
    %p102 = por %p100, %p101
    %p104 = scmp.ne.s32.totalorder %s89, %s103
    %p105 = scmp.eq.s32.totalorder %s16, 0
    %p106 = por %p104, %p105
    %s107 = ssub.s32 %s10, %s17
    %p108 = scmp.eq.s32.totalorder %s107, 0
    %s110 = sadd.s32 %s109, 1
    %s111 = scalar_select %p108, %s109, %s110
    %p114 = pneg %p108
    %p115 = scmp.eq.s32.totalorder %s10, 9
    %p116 = por %p114, %p115
    %p117 = scmp.ne.s32.totalorder %s109, %s112
    %p118 = scmp.eq.s32.totalorder %s10, 0
    %p119 = por %p117, %p118
    %p120 = scmp.ne.s32.totalorder %s109, %s112
    %p121 = scmp.eq.s32.totalorder %s15, 9
    %p122 = por %p120, %p121
    %p123 = scmp.ne.s32.totalorder %s112, %s113
    %p124 = scmp.eq.s32.totalorder %s15, 0
    %p125 = por %p123, %p124
    %p126 = scmp.ne.s32.totalorder %s112, %s113
    %p127 = scmp.eq.s32.totalorder %s16, 9
    %p128 = por %p126, %p127
    %p130 = scmp.ne.s32.totalorder %s113, %s129
    %p131 = scmp.eq.s32.totalorder %s16, 0
    %p132 = por %p130, %p131
    %p133 = scmp.le.s32.totalorder 1, %s10
    %p134 = scmp.lt.s32.totalorder %s10, 11
    %p135 = pnand %p133, %p134
    %p136 = pneg %p135
    // Predicated region
    $region9: #{custom_transform.1} parent=5 // pred_check
      _
    $region10: #{custom_transform.1} parent=5 // pred_check_branch
      %138 = sbr.rel (%p135) target = $region12
    $region11: #{custom_transform.1} parent=5 // pred_region
      %s139 = ssub.s32 %s10, 1
      // Predicated region
      $region13: #{custom_transform.1} parent=11 // pred_check
        %p140 = pneg %p57
      $region14: #{custom_transform.1} parent=11 // pred_check_branch
        %142 = sbr.rel (%p140) target = $region16
      $region15: #{custom_transform.1} parent=11 // pred_region
        _
      $region16: #{custom_transform.1} parent=11 // pred_fallthru
        _
      // Predicated region
      $region17: #{custom_transform.1} parent=11 // pred_check
        %p143 = pneg %p78
      $region18: #{custom_transform.1} parent=11 // pred_check_branch
        %145 = sbr.rel (%p143) target = $region20
      $region19: #{custom_transform.1} parent=11 // pred_region
        _
      $region20: #{custom_transform.1} parent=11 // pred_fallthru
        _
      // Predicated region
      $region21: #{custom_transform.1} parent=11 // pred_check
        %p146 = pneg %p99
      $region22: #{custom_transform.1} parent=11 // pred_check_branch
        %148 = sbr.rel (%p146) target = $region24
      $region23: #{custom_transform.1} parent=11 // pred_region
        _
      $region24: #{custom_transform.1} parent=11 // pred_fallthru
        _
    $region12: #{custom_transform.1} parent=5 // pred_fallthru
      _
    %p149 = scmp.lt.s32.totalorder %s10, 10
    // Predicated region
    $region25: #{custom_transform.1} parent=5 // pred_check
      %p150 = pneg %p149
    $region26: #{custom_transform.1} parent=5 // pred_check_branch
      %152 = sbr.rel (%p150) target = $region28
    $region27: #{custom_transform.1} parent=5 // pred_region
      // Predicated region
      $region29: #{custom_transform.1} parent=27 // pred_check
        %p153 = pneg %p30
      $region30: #{custom_transform.1} parent=27 // pred_check_branch
        %155 = sbr.rel (%p153) target = $region32
      $region31: #{custom_transform.1} parent=27 // pred_region
        %p156 = scmp.lt.s32.totalorder %s10, 9
        %s157 = scalar_select %p156, %s10, 9
        %s158 = smul.addr %s157, 13
        %s159 = smul.addr %s158, 8
        %s160 = scalar_lea.vmem %s0, %s159
      $region32: #{custom_transform.1} parent=27 // pred_fallthru
        _
    $region28: #{custom_transform.1} parent=5 // pred_fallthru
      _
    %p161 = scmp.le.s32.totalorder 1, %s10
    %p162 = scmp.lt.s32.totalorder %s10, 11
    %p163 = pnand %p161, %p162
    %p164 = pneg %p163
    // Predicated region
    $region33: #{custom_transform.1} parent=5 // pred_check
      _
    $region34: #{custom_transform.1} parent=5 // pred_check_branch
      %166 = sbr.rel (%p163) target = $region36
    $region35: #{custom_transform.1} parent=5 // pred_region
      %s167 = ssub.s32 %s10, 1
      %p168 = scmp.lt.s32.totalorder %s15, 9
      %s169 = scalar_select %p168, %s15, 9
      %s170 = smul.addr %s169, 13
      %s171 = smul.addr %s170, 8
      %s172 = scalar_lea.vmem %s0, %s171
      %p173 = pneg %p36
      %p174 = pneg %p33
      %p175 = pneg %p57
      %p176 = pneg %p54
      %p177 = pneg %p78
      %p178 = pneg %p75
      %p179 = pneg %p99
      %p180 = pneg %p96
      %p181 = pneg %p125
      %p182 = pneg %p122
      %p183 = scmp.lt.s32.totalorder %s15, 9
      %s184 = scalar_select %p183, %s15, 9
      %s185 = smul.addr %s184, 26
      %s186 = smul.addr %s185, 8
      %s187 = scalar_lea.vmem %s4, %s186
      %p188 = scmp.lt.s32.totalorder %s15, 9
      %s189 = scalar_select %p188, %s15, 9
      %s190 = smul.addr %s189, 13
      %s191 = smul.addr %s190, 8
      %s192 = scalar_lea.vmem %s0, %s191
      %p193 = scmp.lt.s32.totalorder %s15, 9
      %s194 = scalar_select %p193, %s15, 9
      %s195 = smul.addr %s194, 26
      %s196 = smul.addr %s195, 8
      %s197 = scalar_lea.vmem %s4, %s196
      %v198 = vld [vmem:[%s2] sm:$0xff]
      %v199 = vld [vmem:[%s2 + $0x8] sm:$0xff]
      %v200 = vld [vmem:[%s2 + $0x10] sm:$0xff]
      %v201 = vld [vmem:[%s2 + $0x18] sm:$0xff]
      %v202 = vld [vmem:[%s2 + $0x20] sm:$0xff]
      %v203 = vld [vmem:[%s2 + $0x28] sm:$0xff]
      %v204 = vld [vmem:[%s3] sm:$0xff]
      %v205 = vld [vmem:[%s3 + $0x8] sm:$0xff]
      %v206 = vld [vmem:[%s3 + $0x10] sm:$0xff]
      %v207 = vld [vmem:[%s3 + $0x18] sm:$0xff]
      %v208 = vld [vmem:[%s3 + $0x20] sm:$0xff]
      %v209 = vld [vmem:[%s3 + $0x28] sm:$0xff]
      %v210 = vld [vmem:[%s1] sm:$0x1]
      %vm211 = vcmp.eq.s32.totalorder %v210, 0
      %vm212 = vcmp.eq.s32.totalorder %v210, 1
      %v213 = vsel %vm212, 0.0034722222, 1.0
      %v214 = vsel %vm211, 0.0020833334, %v213
      %vm215 = vcmp.eq.s32.totalorder %v210, 2
      %v216 = vsel %vm215, 0.0, -1.0
      %vm217 = vcmp.gt.f32.partialorder %v204, 0.01
      %vm218 = vcmp.gt.f32.partialorder %v205, 0.01
      %vm219 = vcmp.gt.f32.partialorder %v206, 0.01
      %vm220 = vcmp.gt.f32.partialorder %v207, 0.01
      %vm221 = vcmp.gt.f32.partialorder %v208, 0.01
      %vm222 = vcmp.gt.f32.partialorder %v209, 0.01
      %v223 = vsel %vm215, 1, 0
      %v224 = vlaneseq
      %v225 = vshrl.u32 %v224, 7
      %v226 = vsub.s32 0, %v225
      %v227 = vrot.slane %v223, %v226
      %vm228 = vcmp.eq.s32.totalorder %v227, 1
      %vm229 = vmor %vm217, %vm228
      %vm230 = vmor %vm218, %vm228
      %vm231 = vmor %vm219, %vm228
      %vm232 = vmor %vm220, %vm228
      %vm233 = vmor %vm221, %vm228
      %vm234 = vmor %vm222, %vm228
      %v236 = vlaneseq
      %v237 = vshrl.u32 %v236, 7
      %v238 = vsub.s32 0, %v237
      %v239 = vrot.slane %v214, %v238
      %v241 = vmul.f32 %v198, %v239
      %v242 = vmul.f32 %v199, %v239
      %v243 = vmul.f32 %v200, %v239
      %v244 = vmul.f32 %v201, %v239
      %v245 = vmul.f32 %v202, %v239
      %v246 = vmul.f32 %v203, %v239
      %v248 = vlaneseq
      %v249 = vshrl.u32 %v248, 7
      %v250 = vsub.s32 0, %v249
      %v251 = vrot.slane %v216, %v250
      %v253 = vadd.f32 %v241, %v251
      %v254 = vadd.f32 %v242, %v251
      %v255 = vadd.f32 %v243, %v251
      %v256 = vadd.f32 %v244, %v251
      %v257 = vadd.f32 %v245, %v251
      %v258 = vadd.f32 %v246, %v251
      %v259 = vsel %vm229, %v253, 0.0
      %v260 = vsel %vm230, %v254, 0.0
      %v261 = vsel %vm231, %v255, 0.0
      %v262 = vsel %vm232, %v256, 0.0
      %v263 = vsel %vm233, %v257, 0.0
      %v264 = vsel %vm234, %v258, 0.0
      %v265 = vld [vmem:[%s192] sm:$0xff]
      %v266 = vld [vmem:[%s192 + $0x8] sm:$0xff]
      %v267 = vld [vmem:[%s192 + $0x10] sm:$0xff]
      %v268 = vld [vmem:[%s192 + $0x18] sm:$0xff]
      %v269 = vld [vmem:[%s192 + $0x20] sm:$0xff]
      %v270 = vld [vmem:[%s192 + $0x28] sm:$0xff]
      %v271 = vld [vmem:[%s192 + $0x30] sm:$0xff]
      %v272 = vld [vmem:[%s192 + $0x38] sm:$0xff]
      %v273 = vld [vmem:[%s192 + $0x40] sm:$0xff]
      %v274 = vld [vmem:[%s192 + $0x48] sm:$0xff]
      %v275 = vld [vmem:[%s192 + $0x50] sm:$0xff]
      %v276 = vld [vmem:[%s192 + $0x58] sm:$0xff]
      %v277 = vld [vmem:[%s192 + $0x60] sm:$0xf]
      %v278 = vlaneseq
      %v279 = vand.u32 %v278, 127
      %280 = vset.pattern.permute.xlu0 0
      %281 = vperm.xlu0 %280, %v265
      %v282 = vpop.permute.xlu0 %281
      %283 = vset.pattern.permute.xlu0 0
      %284 = vperm.xlu0 %283, %v266
      %v285 = vpop.permute.xlu0 %284
      %286 = vset.pattern.permute.xlu0 0
      %287 = vperm.xlu0 %286, %v267
      %v288 = vpop.permute.xlu0 %287
      %289 = vset.pattern.permute.xlu0 0
      %290 = vperm.xlu0 %289, %v268
      %v291 = vpop.permute.xlu0 %290
      %292 = vset.pattern.permute.xlu0 0
      %293 = vperm.xlu0 %292, %v269
      %v294 = vpop.permute.xlu0 %293
      %295 = vset.pattern.permute.xlu0 0
      %296 = vperm.xlu0 %295, %v270
      %v297 = vpop.permute.xlu0 %296
      %298 = vset.pattern.permute.xlu0 0
      %299 = vperm.xlu0 %298, %v271
      %v300 = vpop.permute.xlu0 %299
      %301 = vset.pattern.permute.xlu0 0
      %302 = vperm.xlu0 %301, %v272
      %v303 = vpop.permute.xlu0 %302
      %304 = vset.pattern.permute.xlu0 0
      %305 = vperm.xlu0 %304, %v273
      %v306 = vpop.permute.xlu0 %305
      %307 = vset.pattern.permute.xlu0 0
      %308 = vperm.xlu0 %307, %v274
      %v309 = vpop.permute.xlu0 %308
      %310 = vset.pattern.permute.xlu0 0
      %311 = vperm.xlu0 %310, %v275
      %v312 = vpop.permute.xlu0 %311
      %313 = vset.pattern.permute.xlu0 0
      %314 = vperm.xlu0 %313, %v276
      %v315 = vpop.permute.xlu0 %314
      %316 = vset.pattern.permute.xlu0 0
      %317 = vperm.xlu0 %316, %v277
      %v318 = vpop.permute.xlu0 %317
      %vm319 = vcmp.eq.s32.totalorder %v282, %v279
      %vm320 = vcmp.eq.s32.totalorder %v285, %v279
      %vm321 = vcmp.eq.s32.totalorder %v288, %v279
      %vm322 = vcmp.eq.s32.totalorder %v291, %v279
      %vm323 = vcmp.eq.s32.totalorder %v294, %v279
      %vm324 = vcmp.eq.s32.totalorder %v297, %v279
      %vm325 = vcmp.eq.s32.totalorder %v300, %v279
      %vm326 = vcmp.eq.s32.totalorder %v303, %v279
      %vm327 = vcmp.eq.s32.totalorder %v306, %v279
      %vm328 = vcmp.eq.s32.totalorder %v309, %v279
      %vm329 = vcmp.eq.s32.totalorder %v312, %v279
      %vm330 = vcmp.eq.s32.totalorder %v315, %v279
      %vm331 = vcmp.eq.s32.totalorder %v318, %v279
      %v332 = vsel %vm319, 1, 0
      %v333 = vsel %vm320, 1, 0
      %v334 = vsel %vm321, 1, 0
      %v335 = vsel %vm322, 1, 0
      %v336 = vsel %vm323, 1, 0
      %v337 = vsel %vm324, 1, 0
      %v338 = vsel %vm325, 1, 0
      %v339 = vsel %vm326, 1, 0
      %v340 = vsel %vm327, 1, 0
      %v341 = vsel %vm328, 1, 0
      %v342 = vsel %vm329, 1, 0
      %v343 = vsel %vm330, 1, 0
      %v344 = vsel %vm331, 1, 0
      %v345 = vcvt.s32.f32 %v332
      %v346 = vcvt.s32.f32 %v333
      %v347 = vcvt.s32.f32 %v334
      %v348 = vcvt.s32.f32 %v335
      %v349 = vcvt.s32.f32 %v336
      %v350 = vcvt.s32.f32 %v337
      %v351 = vcvt.s32.f32 %v338
      %v352 = vcvt.s32.f32 %v339
      %v353 = vcvt.s32.f32 %v340
      %v354 = vcvt.s32.f32 %v341
      %v355 = vcvt.s32.f32 %v342
      %v356 = vcvt.s32.f32 %v343
      %v357 = vcvt.s32.f32 %v344
      %vm358 = vcmask 392192
      %v360 = vsel %vm358, %v345, 0
      %v363 = vsel %vm358, %v346, 0
      %v366 = vsel %vm358, %v347, 0
      %v369 = vsel %vm358, %v348, 0
      %v372 = vsel %vm358, %v349, 0
      %v375 = vsel %vm358, %v350, 0
      %v378 = vsel %vm358, %v351, 0
      %v381 = vsel %vm358, %v352, 0
      %v384 = vsel %vm358, %v353, 0
      %v387 = vsel %vm358, %v354, 0
      %v390 = vsel %vm358, %v355, 0
      %v393 = vsel %vm358, %v356, 0
      %v396 = vsel %vm358, %v357, 0
      %398 = vmatprep.subr.mxu0 0.0
      %399 = vmatpush1.msra.mxu0 0.0
      %400 = vmatprep.subr.mxu0 0.0
      %401 = vmatpush1.msra.mxu0 0.0
      %402 = vmatprep.subr.mxu0 0.0
      %403 = vmatpush1.msra.mxu0 0.0
      %404 = vmatprep.subr.mxu0 0.0
      %405 = vmatpush1.msra.mxu0 0.0
      %406 = vmatprep.subr.mxu0 0.0
      %407 = vmatpush1.msra.mxu0 0.0
      %408 = vmatprep.subr.mxu0 0.0
      %409 = vmatpush1.msra.mxu0 0.0
      %410 = vmatprep.subr.mxu0 0.0
      %411 = vmatpush1.msra.mxu0 0.0
      %412 = vmatprep.subr.mxu0 0.0
      %413 = vmatpush1.msra.mxu0 0.0
      %414 = vmatprep.subr.mxu0 0.0
      %415 = vmatpush1.msra.mxu0 0.0
      %416 = vmatprep.subr.mxu0 0.0
      %417 = vmatpush1.msra.mxu0 0.0
      %418 = vmatprep.subr.mxu0 0.0
      %v419 = vand.u32 %v264, 4294901760
      %420 = vmatpush1.msra.mxu0 %v419
      %421 = vmatprep.subr.mxu0 0.0
      %v422 = vand.u32 %v263, 4294901760
      %423 = vmatpush1.msra.mxu0 %v422
      %424 = vmatprep.subr.mxu0 0.0
      %v425 = vand.u32 %v262, 4294901760
      %426 = vmatpush1.msra.mxu0 %v425
      %427 = vmatprep.subr.mxu0 0.0
      %v428 = vand.u32 %v261, 4294901760
      %429 = vmatpush1.msra.mxu0 %v428
      %430 = vmatprep.subr.mxu0 0.0
      %v431 = vand.u32 %v260, 4294901760
      %432 = vmatpush1.msra.mxu0 %v431
      %433 = vmatprep.subr.mxu0 0.0
      %v434 = vand.u32 %v259, 4294901760
      %435 = vmatpush1.msra.mxu0 %v434
      %436 = vmatprep.subr.mxu0 0.0
      %437 = vmatpush2.msra.mxu0 0.0
      %438 = vmatprep.subr.mxu0 0.0
      %439 = vmatpush2.msra.mxu0 0.0
      %440 = vmatprep.subr.mxu0 0.0
      %441 = vmatpush2.msra.mxu0 0.0
      %442 = vmatprep.subr.mxu0 0.0
      %443 = vmatpush2.msra.mxu0 0.0
      %444 = vmatprep.subr.mxu0 0.0
      %445 = vmatpush2.msra.mxu0 0.0
      %446 = vmatprep.subr.mxu0 0.0
      %447 = vmatpush2.msra.mxu0 0.0
      %448 = vmatprep.subr.mxu0 0.0
      %449 = vmatpush2.msra.mxu0 0.0
      %450 = vmatprep.subr.mxu0 0.0
      %451 = vmatpush2.msra.mxu0 0.0
      %452 = vmatprep.subr.mxu0 0.0
      %453 = vmatpush2.msra.mxu0 0.0
      %454 = vmatprep.subr.mxu0 0.0
      %455 = vmatpush2.msra.mxu0 0.0
      %456 = vmatprep.subr.mxu0 0.0
      %457 = vmatpush2.msra.mxu0 0.0
      %458 = vmatprep.subr.mxu0 0.0
      %459 = vmatpush2.msra.mxu0 0.0
      %460 = vmatprep.subr.mxu0 0.0
      %461 = vmatpush2.msra.mxu0 0.0
      %462 = vmatprep.subr.mxu0 0.0
      %463 = vmatpush2.msra.mxu0 0.0
      %464 = vmatprep.subr.mxu0 0.0
      %465 = vmatpush2.msra.mxu0 0.0
      %466 = vmatprep.subr.mxu0 0.0
      %467 = vmatpush2.msra.mxu0 0.0
      %468 = vmatprep.mubr.f32.mxu0 0.0
      %v469 = vand.u32 %v360, 4294901760
      %v470 = vsub.f32 %v360, %v469
      %v471 = vand.u32 %v470, 4294901760
      %v472 = vsub.f32 %v470, %v471
      %v473 = vand.u32 %v472, 4294901760
      %474 = vmatmul.mubr.f32.gmra.mxu0 %v473
      %v475 = vpop.f32.mrf.mxu0
      %v476 = vadd.f32 0.0, %v475
      %v477 = vpop.f32.mrf.mxu0
      %478 = vmatprep.mubr.f32.mxu0 0.0
      %v479 = vand.u32 %v363, 4294901760
      %v480 = vsub.f32 %v363, %v479
      %v481 = vand.u32 %v480, 4294901760
      %v482 = vsub.f32 %v480, %v481
      %v483 = vand.u32 %v482, 4294901760
      %484 = vmatmul.mubr.f32.gmra.mxu0 %v483
      %v485 = vpop.f32.mrf.mxu0
      %v486 = vadd.f32 0.0, %v485
      %v487 = vpop.f32.mrf.mxu0
      %488 = vmatprep.mubr.f32.mxu0 0.0
      %v489 = vand.u32 %v366, 4294901760
      %v490 = vsub.f32 %v366, %v489
      %v491 = vand.u32 %v490, 4294901760
      %v492 = vsub.f32 %v490, %v491
      %v493 = vand.u32 %v492, 4294901760
      %494 = vmatmul.mubr.f32.gmra.mxu0 %v493
      %v495 = vpop.f32.mrf.mxu0
      %v496 = vadd.f32 0.0, %v495
      %v497 = vpop.f32.mrf.mxu0
      %498 = vmatprep.mubr.f32.mxu0 0.0
      %v499 = vand.u32 %v369, 4294901760
      %v500 = vsub.f32 %v369, %v499
      %v501 = vand.u32 %v500, 4294901760
      %v502 = vsub.f32 %v500, %v501
      %v503 = vand.u32 %v502, 4294901760
      %504 = vmatmul.mubr.f32.gmra.mxu0 %v503
      %v505 = vpop.f32.mrf.mxu0
      %v506 = vadd.f32 0.0, %v505
      %v507 = vpop.f32.mrf.mxu0
      %508 = vmatprep.mubr.f32.mxu0 0.0
      %v509 = vand.u32 %v372, 4294901760
      %v510 = vsub.f32 %v372, %v509
      %v511 = vand.u32 %v510, 4294901760
      %v512 = vsub.f32 %v510, %v511
      %v513 = vand.u32 %v512, 4294901760
      %514 = vmatmul.mubr.f32.gmra.mxu0 %v513
      %v515 = vpop.f32.mrf.mxu0
      %v516 = vadd.f32 0.0, %v515
      %v517 = vpop.f32.mrf.mxu0
      %518 = vmatprep.mubr.f32.mxu0 0.0
      %v519 = vand.u32 %v375, 4294901760
      %v520 = vsub.f32 %v375, %v519
      %v521 = vand.u32 %v520, 4294901760
      %v522 = vsub.f32 %v520, %v521
      %v523 = vand.u32 %v522, 4294901760
      %524 = vmatmul.mubr.f32.gmra.mxu0 %v523
      %v525 = vpop.f32.mrf.mxu0
      %v526 = vadd.f32 0.0, %v525
      %v527 = vpop.f32.mrf.mxu0
      %528 = vmatprep.mubr.f32.mxu0 0.0
      %v529 = vand.u32 %v378, 4294901760
      %v530 = vsub.f32 %v378, %v529
      %v531 = vand.u32 %v530, 4294901760
      %v532 = vsub.f32 %v530, %v531
      %v533 = vand.u32 %v532, 4294901760
      %534 = vmatmul.mubr.f32.gmra.mxu0 %v533
      %v535 = vpop.f32.mrf.mxu0
      %v536 = vadd.f32 0.0, %v535
      %v537 = vpop.f32.mrf.mxu0
      %538 = vmatprep.mubr.f32.mxu0 0.0
      %v539 = vand.u32 %v381, 4294901760
      %v540 = vsub.f32 %v381, %v539
      %v541 = vand.u32 %v540, 4294901760
      %v542 = vsub.f32 %v540, %v541
      %v543 = vand.u32 %v542, 4294901760
      %544 = vmatmul.mubr.f32.gmra.mxu0 %v543
      %v545 = vpop.f32.mrf.mxu0
      %v546 = vadd.f32 0.0, %v545
      %v547 = vpop.f32.mrf.mxu0
      %548 = vmatprep.mubr.f32.mxu0 0.0
      %v549 = vand.u32 %v384, 4294901760
      %v550 = vsub.f32 %v384, %v549
      %v551 = vand.u32 %v550, 4294901760
      %v552 = vsub.f32 %v550, %v551
      %v553 = vand.u32 %v552, 4294901760
      %554 = vmatmul.mubr.f32.gmra.mxu0 %v553
      %v555 = vpop.f32.mrf.mxu0
      %v556 = vadd.f32 0.0, %v555
      %v557 = vpop.f32.mrf.mxu0
      %558 = vmatprep.mubr.f32.mxu0 0.0
      %v559 = vand.u32 %v387, 4294901760
      %v560 = vsub.f32 %v387, %v559
      %v561 = vand.u32 %v560, 4294901760
      %v562 = vsub.f32 %v560, %v561
      %v563 = vand.u32 %v562, 4294901760
      %564 = vmatmul.mubr.f32.gmra.mxu0 %v563
      %v565 = vpop.f32.mrf.mxu0
      %v566 = vadd.f32 0.0, %v565
      %v567 = vpop.f32.mrf.mxu0
      %568 = vmatprep.mubr.f32.mxu0 0.0
      %v569 = vand.u32 %v390, 4294901760
      %v570 = vsub.f32 %v390, %v569
      %v571 = vand.u32 %v570, 4294901760
      %v572 = vsub.f32 %v570, %v571
      %v573 = vand.u32 %v572, 4294901760
      %574 = vmatmul.mubr.f32.gmra.mxu0 %v573
      %v575 = vpop.f32.mrf.mxu0
      %v576 = vadd.f32 0.0, %v575
      %v577 = vpop.f32.mrf.mxu0
      %578 = vmatprep.mubr.f32.mxu0 0.0
      %v579 = vand.u32 %v393, 4294901760
      %v580 = vsub.f32 %v393, %v579
      %v581 = vand.u32 %v580, 4294901760
      %v582 = vsub.f32 %v580, %v581
      %v583 = vand.u32 %v582, 4294901760
      %584 = vmatmul.mubr.f32.gmra.mxu0 %v583
      %v585 = vpop.f32.mrf.mxu0
      %v586 = vadd.f32 0.0, %v585
      %v587 = vpop.f32.mrf.mxu0
      %588 = vmatprep.mubr.f32.mxu0 0.0
      %v589 = vand.u32 %v396, 4294901760
      %v590 = vsub.f32 %v396, %v589
      %v591 = vand.u32 %v590, 4294901760
      %v592 = vsub.f32 %v590, %v591
      %v593 = vand.u32 %v592, 4294901760
      %594 = vmatmul.mubr.f32.gmra.mxu0 %v593
      %v595 = vpop.f32.mrf.mxu0
      %v596 = vadd.f32 0.0, %v595
      %v597 = vpop.f32.mrf.mxu0
      %598 = vdwg.mxu0
      %599 = vmatprep.subr.mxu0 0.0
      %600 = vmatpush1.msra.mxu0 0.0
      %601 = vmatprep.subr.mxu0 0.0
      %602 = vmatpush1.msra.mxu0 0.0
      %603 = vmatprep.subr.mxu0 0.0
      %604 = vmatpush1.msra.mxu0 0.0
      %605 = vmatprep.subr.mxu0 0.0
      %606 = vmatpush1.msra.mxu0 0.0
      %607 = vmatprep.subr.mxu0 0.0
      %608 = vmatpush1.msra.mxu0 0.0
      %609 = vmatprep.subr.mxu0 0.0
      %610 = vmatpush1.msra.mxu0 0.0
      %611 = vmatprep.subr.mxu0 0.0
      %612 = vmatpush1.msra.mxu0 0.0
      %613 = vmatprep.subr.mxu0 0.0
      %614 = vmatpush1.msra.mxu0 0.0
      %615 = vmatprep.subr.mxu0 0.0
      %616 = vmatpush1.msra.mxu0 0.0
      %617 = vmatprep.subr.mxu0 0.0
      %618 = vmatpush1.msra.mxu0 0.0
      %619 = vmatprep.subr.mxu0 0.0
      %v620 = vand.u32 %v264, 4294901760
      %v621 = vsub.f32 %v264, %v620
      %v622 = vand.u32 %v621, 4294901760
      %v623 = vsub.f32 %v621, %v622
      %v624 = vand.u32 %v623, 4294901760
      %625 = vmatpush1.msra.mxu0 %v624
      %626 = vmatprep.subr.mxu0 0.0
      %v627 = vand.u32 %v263, 4294901760
      %v628 = vsub.f32 %v263, %v627
      %v629 = vand.u32 %v628, 4294901760
      %v630 = vsub.f32 %v628, %v629
      %v631 = vand.u32 %v630, 4294901760
      %632 = vmatpush1.msra.mxu0 %v631
      %633 = vmatprep.subr.mxu0 0.0
      %v634 = vand.u32 %v262, 4294901760
      %v635 = vsub.f32 %v262, %v634
      %v636 = vand.u32 %v635, 4294901760
      %v637 = vsub.f32 %v635, %v636
      %v638 = vand.u32 %v637, 4294901760
      %639 = vmatpush1.msra.mxu0 %v638
      %640 = vmatprep.subr.mxu0 0.0
      %v641 = vand.u32 %v261, 4294901760
      %v642 = vsub.f32 %v261, %v641
      %v643 = vand.u32 %v642, 4294901760
      %v644 = vsub.f32 %v642, %v643
      %v645 = vand.u32 %v644, 4294901760
      %646 = vmatpush1.msra.mxu0 %v645
      %647 = vmatprep.subr.mxu0 0.0
      %v648 = vand.u32 %v260, 4294901760
      %v649 = vsub.f32 %v260, %v648
      %v650 = vand.u32 %v649, 4294901760
      %v651 = vsub.f32 %v649, %v650
      %v652 = vand.u32 %v651, 4294901760
      %653 = vmatpush1.msra.mxu0 %v652
      %654 = vmatprep.subr.mxu0 0.0
      %v655 = vand.u32 %v259, 4294901760
      %v656 = vsub.f32 %v259, %v655
      %v657 = vand.u32 %v656, 4294901760
      %v658 = vsub.f32 %v656, %v657
      %v659 = vand.u32 %v658, 4294901760
      %660 = vmatpush1.msra.mxu0 %v659
      %661 = vmatprep.subr.mxu0 0.0
      %662 = vmatpush2.msra.mxu0 0.0
      %663 = vmatprep.subr.mxu0 0.0
      %664 = vmatpush2.msra.mxu0 0.0
      %665 = vmatprep.subr.mxu0 0.0
      %666 = vmatpush2.msra.mxu0 0.0
      %667 = vmatprep.subr.mxu0 0.0
      %668 = vmatpush2.msra.mxu0 0.0
      %669 = vmatprep.subr.mxu0 0.0
      %670 = vmatpush2.msra.mxu0 0.0
      %671 = vmatprep.subr.mxu0 0.0
      %672 = vmatpush2.msra.mxu0 0.0
      %673 = vmatprep.subr.mxu0 0.0
      %674 = vmatpush2.msra.mxu0 0.0
      %675 = vmatprep.subr.mxu0 0.0
      %676 = vmatpush2.msra.mxu0 0.0
      %677 = vmatprep.subr.mxu0 0.0
      %678 = vmatpush2.msra.mxu0 0.0
      %679 = vmatprep.subr.mxu0 0.0
      %680 = vmatpush2.msra.mxu0 0.0
      %681 = vmatprep.subr.mxu0 0.0
      %682 = vmatpush2.msra.mxu0 0.0
      %683 = vmatprep.subr.mxu0 0.0
      %684 = vmatpush2.msra.mxu0 0.0
      %685 = vmatprep.subr.mxu0 0.0
      %686 = vmatpush2.msra.mxu0 0.0
      %687 = vmatprep.subr.mxu0 0.0
      %688 = vmatpush2.msra.mxu0 0.0
      %689 = vmatprep.subr.mxu0 0.0
      %690 = vmatpush2.msra.mxu0 0.0
      %691 = vmatprep.subr.mxu0 0.0
      %692 = vmatpush2.msra.mxu0 0.0
      %693 = vmatprep.mubr.f32.mxu0 0.0
      %v694 = vand.u32 %v360, 4294901760
      %695 = vmatmul.mubr.f32.gmra.mxu0 %v694
      %v696 = vpop.f32.mrf.mxu0
      %v697 = vadd.f32 %v476, %v696
      %v698 = vpop.f32.mrf.mxu0
      %699 = vmatprep.mubr.f32.mxu0 0.0
      %v700 = vand.u32 %v363, 4294901760
      %701 = vmatmul.mubr.f32.gmra.mxu0 %v700
      %v702 = vpop.f32.mrf.mxu0
      %v703 = vadd.f32 %v486, %v702
      %v704 = vpop.f32.mrf.mxu0
      %705 = vmatprep.mubr.f32.mxu0 0.0
      %v706 = vand.u32 %v366, 4294901760
      %707 = vmatmul.mubr.f32.gmra.mxu0 %v706
      %v708 = vpop.f32.mrf.mxu0
      %v709 = vadd.f32 %v496, %v708
      %v710 = vpop.f32.mrf.mxu0
      %711 = vmatprep.mubr.f32.mxu0 0.0
      %v712 = vand.u32 %v369, 4294901760
      %713 = vmatmul.mubr.f32.gmra.mxu0 %v712
      %v714 = vpop.f32.mrf.mxu0
      %v715 = vadd.f32 %v506, %v714
      %v716 = vpop.f32.mrf.mxu0
      %717 = vmatprep.mubr.f32.mxu0 0.0
      %v718 = vand.u32 %v372, 4294901760
      %719 = vmatmul.mubr.f32.gmra.mxu0 %v718
      %v720 = vpop.f32.mrf.mxu0
      %v721 = vadd.f32 %v516, %v720
      %v722 = vpop.f32.mrf.mxu0
      %723 = vmatprep.mubr.f32.mxu0 0.0
      %v724 = vand.u32 %v375, 4294901760
      %725 = vmatmul.mubr.f32.gmra.mxu0 %v724
      %v726 = vpop.f32.mrf.mxu0
      %v727 = vadd.f32 %v526, %v726
      %v728 = vpop.f32.mrf.mxu0
      %729 = vmatprep.mubr.f32.mxu0 0.0
      %v730 = vand.u32 %v378, 4294901760
      %731 = vmatmul.mubr.f32.gmra.mxu0 %v730
      %v732 = vpop.f32.mrf.mxu0
      %v733 = vadd.f32 %v536, %v732
      %v734 = vpop.f32.mrf.mxu0
      %735 = vmatprep.mubr.f32.mxu0 0.0
      %v736 = vand.u32 %v381, 4294901760
      %737 = vmatmul.mubr.f32.gmra.mxu0 %v736
      %v738 = vpop.f32.mrf.mxu0
      %v739 = vadd.f32 %v546, %v738
      %v740 = vpop.f32.mrf.mxu0
      %741 = vmatprep.mubr.f32.mxu0 0.0
      %v742 = vand.u32 %v384, 4294901760
      %743 = vmatmul.mubr.f32.gmra.mxu0 %v742
      %v744 = vpop.f32.mrf.mxu0
      %v745 = vadd.f32 %v556, %v744
      %v746 = vpop.f32.mrf.mxu0
      %747 = vmatprep.mubr.f32.mxu0 0.0
      %v748 = vand.u32 %v387, 4294901760
      %749 = vmatmul.mubr.f32.gmra.mxu0 %v748
      %v750 = vpop.f32.mrf.mxu0
      %v751 = vadd.f32 %v566, %v750
      %v752 = vpop.f32.mrf.mxu0
      %753 = vmatprep.mubr.f32.mxu0 0.0
      %v754 = vand.u32 %v390, 4294901760
      %755 = vmatmul.mubr.f32.gmra.mxu0 %v754
      %v756 = vpop.f32.mrf.mxu0
      %v757 = vadd.f32 %v576, %v756
      %v758 = vpop.f32.mrf.mxu0
      %759 = vmatprep.mubr.f32.mxu0 0.0
      %v760 = vand.u32 %v393, 4294901760
      %761 = vmatmul.mubr.f32.gmra.mxu0 %v760
      %v762 = vpop.f32.mrf.mxu0
      %v763 = vadd.f32 %v586, %v762
      %v764 = vpop.f32.mrf.mxu0
      %765 = vmatprep.mubr.f32.mxu0 0.0
      %v766 = vand.u32 %v396, 4294901760
      %767 = vmatmul.mubr.f32.gmra.mxu0 %v766
      %v768 = vpop.f32.mrf.mxu0
      %v769 = vadd.f32 %v596, %v768
      %v770 = vpop.f32.mrf.mxu0
      %771 = vdwg.mxu0
      %772 = vmatprep.subr.mxu0 0.0
      %773 = vmatpush1.msra.mxu0 0.0
      %774 = vmatprep.subr.mxu0 0.0
      %775 = vmatpush1.msra.mxu0 0.0
      %776 = vmatprep.subr.mxu0 0.0
      %777 = vmatpush1.msra.mxu0 0.0
      %778 = vmatprep.subr.mxu0 0.0
      %779 = vmatpush1.msra.mxu0 0.0
      %780 = vmatprep.subr.mxu0 0.0
      %781 = vmatpush1.msra.mxu0 0.0
      %782 = vmatprep.subr.mxu0 0.0
      %783 = vmatpush1.msra.mxu0 0.0
      %784 = vmatprep.subr.mxu0 0.0
      %785 = vmatpush1.msra.mxu0 0.0
      %786 = vmatprep.subr.mxu0 0.0
      %787 = vmatpush1.msra.mxu0 0.0
      %788 = vmatprep.subr.mxu0 0.0
      %789 = vmatpush1.msra.mxu0 0.0
      %790 = vmatprep.subr.mxu0 0.0
      %791 = vmatpush1.msra.mxu0 0.0
      %792 = vmatprep.subr.mxu0 0.0
      %v793 = vand.u32 %v264, 4294901760
      %v794 = vsub.f32 %v264, %v793
      %795 = vmatpush1.msra.mxu0 %v794
      %796 = vmatprep.subr.mxu0 0.0
      %v797 = vand.u32 %v263, 4294901760
      %v798 = vsub.f32 %v263, %v797
      %799 = vmatpush1.msra.mxu0 %v798
      %800 = vmatprep.subr.mxu0 0.0
      %v801 = vand.u32 %v262, 4294901760
      %v802 = vsub.f32 %v262, %v801
      %803 = vmatpush1.msra.mxu0 %v802
      %804 = vmatprep.subr.mxu0 0.0
      %v805 = vand.u32 %v261, 4294901760
      %v806 = vsub.f32 %v261, %v805
      %807 = vmatpush1.msra.mxu0 %v806
      %808 = vmatprep.subr.mxu0 0.0
      %v809 = vand.u32 %v260, 4294901760
      %v810 = vsub.f32 %v260, %v809
      %811 = vmatpush1.msra.mxu0 %v810
      %812 = vmatprep.subr.mxu0 0.0
      %v813 = vand.u32 %v259, 4294901760
      %v814 = vsub.f32 %v259, %v813
      %815 = vmatpush1.msra.mxu0 %v814
      %816 = vmatprep.subr.mxu0 0.0
      %817 = vmatpush2.msra.mxu0 0.0
      %818 = vmatprep.subr.mxu0 0.0
      %819 = vmatpush2.msra.mxu0 0.0
      %820 = vmatprep.subr.mxu0 0.0
      %821 = vmatpush2.msra.mxu0 0.0
      %822 = vmatprep.subr.mxu0 0.0
      %823 = vmatpush2.msra.mxu0 0.0
      %824 = vmatprep.subr.mxu0 0.0
      %825 = vmatpush2.msra.mxu0 0.0
      %826 = vmatprep.subr.mxu0 0.0
      %827 = vmatpush2.msra.mxu0 0.0
      %828 = vmatprep.subr.mxu0 0.0
      %829 = vmatpush2.msra.mxu0 0.0
      %830 = vmatprep.subr.mxu0 0.0
      %831 = vmatpush2.msra.mxu0 0.0
      %832 = vmatprep.subr.mxu0 0.0
      %833 = vmatpush2.msra.mxu0 0.0
      %834 = vmatprep.subr.mxu0 0.0
      %835 = vmatpush2.msra.mxu0 0.0
      %836 = vmatprep.subr.mxu0 0.0
      %837 = vmatpush2.msra.mxu0 0.0
      %838 = vmatprep.subr.mxu0 0.0
      %839 = vmatpush2.msra.mxu0 0.0
      %840 = vmatprep.subr.mxu0 0.0
      %841 = vmatpush2.msra.mxu0 0.0
      %842 = vmatprep.subr.mxu0 0.0
      %843 = vmatpush2.msra.mxu0 0.0
      %844 = vmatprep.subr.mxu0 0.0
      %845 = vmatpush2.msra.mxu0 0.0
      %846 = vmatprep.subr.mxu0 0.0
      %847 = vmatpush2.msra.mxu0 0.0
      %848 = vmatprep.mubr.f32.mxu0 0.0
      %v849 = vand.u32 %v360, 4294901760
      %v850 = vsub.f32 %v360, %v849
      %851 = vmatmul.mubr.f32.gmra.mxu0 %v850
      %v852 = vpop.f32.mrf.mxu0
      %v853 = vadd.f32 %v697, %v852
      %v854 = vpop.f32.mrf.mxu0
      %855 = vmatprep.mubr.f32.mxu0 0.0
      %v856 = vand.u32 %v363, 4294901760
      %v857 = vsub.f32 %v363, %v856
      %858 = vmatmul.mubr.f32.gmra.mxu0 %v857
      %v859 = vpop.f32.mrf.mxu0
      %v860 = vadd.f32 %v703, %v859
      %v861 = vpop.f32.mrf.mxu0
      %862 = vmatprep.mubr.f32.mxu0 0.0
      %v863 = vand.u32 %v366, 4294901760
      %v864 = vsub.f32 %v366, %v863
      %865 = vmatmul.mubr.f32.gmra.mxu0 %v864
      %v866 = vpop.f32.mrf.mxu0
      %v867 = vadd.f32 %v709, %v866
      %v868 = vpop.f32.mrf.mxu0
      %869 = vmatprep.mubr.f32.mxu0 0.0
      %v870 = vand.u32 %v369, 4294901760
      %v871 = vsub.f32 %v369, %v870
      %872 = vmatmul.mubr.f32.gmra.mxu0 %v871
      %v873 = vpop.f32.mrf.mxu0
      %v874 = vadd.f32 %v715, %v873
      %v875 = vpop.f32.mrf.mxu0
      %876 = vmatprep.mubr.f32.mxu0 0.0
      %v877 = vand.u32 %v372, 4294901760
      %v878 = vsub.f32 %v372, %v877
      %879 = vmatmul.mubr.f32.gmra.mxu0 %v878
      %v880 = vpop.f32.mrf.mxu0
      %v881 = vadd.f32 %v721, %v880
      %v882 = vpop.f32.mrf.mxu0
      %883 = vmatprep.mubr.f32.mxu0 0.0
      %v884 = vand.u32 %v375, 4294901760
      %v885 = vsub.f32 %v375, %v884
      %886 = vmatmul.mubr.f32.gmra.mxu0 %v885
      %v887 = vpop.f32.mrf.mxu0
      %v888 = vadd.f32 %v727, %v887
      %v889 = vpop.f32.mrf.mxu0
      %890 = vmatprep.mubr.f32.mxu0 0.0
      %v891 = vand.u32 %v378, 4294901760
      %v892 = vsub.f32 %v378, %v891
      %893 = vmatmul.mubr.f32.gmra.mxu0 %v892
      %v894 = vpop.f32.mrf.mxu0
      %v895 = vadd.f32 %v733, %v894
      %v896 = vpop.f32.mrf.mxu0
      %897 = vmatprep.mubr.f32.mxu0 0.0
      %v898 = vand.u32 %v381, 4294901760
      %v899 = vsub.f32 %v381, %v898
      %900 = vmatmul.mubr.f32.gmra.mxu0 %v899
      %v901 = vpop.f32.mrf.mxu0
      %v902 = vadd.f32 %v739, %v901
      %v903 = vpop.f32.mrf.mxu0
      %904 = vmatprep.mubr.f32.mxu0 0.0
      %v905 = vand.u32 %v384, 4294901760
      %v906 = vsub.f32 %v384, %v905
      %907 = vmatmul.mubr.f32.gmra.mxu0 %v906
      %v908 = vpop.f32.mrf.mxu0
      %v909 = vadd.f32 %v745, %v908
      %v910 = vpop.f32.mrf.mxu0
      %911 = vmatprep.mubr.f32.mxu0 0.0
      %v912 = vand.u32 %v387, 4294901760
      %v913 = vsub.f32 %v387, %v912
      %914 = vmatmul.mubr.f32.gmra.mxu0 %v913
      %v915 = vpop.f32.mrf.mxu0
      %v916 = vadd.f32 %v751, %v915
      %v917 = vpop.f32.mrf.mxu0
      %918 = vmatprep.mubr.f32.mxu0 0.0
      %v919 = vand.u32 %v390, 4294901760
      %v920 = vsub.f32 %v390, %v919
      %921 = vmatmul.mubr.f32.gmra.mxu0 %v920
      %v922 = vpop.f32.mrf.mxu0
      %v923 = vadd.f32 %v757, %v922
      %v924 = vpop.f32.mrf.mxu0
      %925 = vmatprep.mubr.f32.mxu0 0.0
      %v926 = vand.u32 %v393, 4294901760
      %v927 = vsub.f32 %v393, %v926
      %928 = vmatmul.mubr.f32.gmra.mxu0 %v927
      %v929 = vpop.f32.mrf.mxu0
      %v930 = vadd.f32 %v763, %v929
      %v931 = vpop.f32.mrf.mxu0
      %932 = vmatprep.mubr.f32.mxu0 0.0
      %v933 = vand.u32 %v396, 4294901760
      %v934 = vsub.f32 %v396, %v933
      %935 = vmatmul.mubr.f32.gmra.mxu0 %v934
      %v936 = vpop.f32.mrf.mxu0
      %v937 = vadd.f32 %v769, %v936
      %v938 = vpop.f32.mrf.mxu0
      %939 = vdwg.mxu0
      %940 = vmatprep.subr.mxu0 0.0
      %941 = vmatpush1.msra.mxu0 0.0
      %942 = vmatprep.subr.mxu0 0.0
      %943 = vmatpush1.msra.mxu0 0.0
      %944 = vmatprep.subr.mxu0 0.0
      %945 = vmatpush1.msra.mxu0 0.0
      %946 = vmatprep.subr.mxu0 0.0
      %947 = vmatpush1.msra.mxu0 0.0
      %948 = vmatprep.subr.mxu0 0.0
      %949 = vmatpush1.msra.mxu0 0.0
      %950 = vmatprep.subr.mxu0 0.0
      %951 = vmatpush1.msra.mxu0 0.0
      %952 = vmatprep.subr.mxu0 0.0
      %953 = vmatpush1.msra.mxu0 0.0
      %954 = vmatprep.subr.mxu0 0.0
      %955 = vmatpush1.msra.mxu0 0.0
      %956 = vmatprep.subr.mxu0 0.0
      %957 = vmatpush1.msra.mxu0 0.0
      %958 = vmatprep.subr.mxu0 0.0
      %959 = vmatpush1.msra.mxu0 0.0
      %960 = vmatprep.subr.mxu0 0.0
      %v961 = vand.u32 %v264, 4294901760
      %962 = vmatpush1.msra.mxu0 %v961
      %963 = vmatprep.subr.mxu0 0.0
      %v964 = vand.u32 %v263, 4294901760
      %965 = vmatpush1.msra.mxu0 %v964
      %966 = vmatprep.subr.mxu0 0.0
      %v967 = vand.u32 %v262, 4294901760
      %968 = vmatpush1.msra.mxu0 %v967
      %969 = vmatprep.subr.mxu0 0.0
      %v970 = vand.u32 %v261, 4294901760
      %971 = vmatpush1.msra.mxu0 %v970
      %972 = vmatprep.subr.mxu0 0.0
      %v973 = vand.u32 %v260, 4294901760
      %974 = vmatpush1.msra.mxu0 %v973
      %975 = vmatprep.subr.mxu0 0.0
      %v976 = vand.u32 %v259, 4294901760
      %977 = vmatpush1.msra.mxu0 %v976
      %978 = vmatprep.subr.mxu0 0.0
      %979 = vmatpush2.msra.mxu0 0.0
      %980 = vmatprep.subr.mxu0 0.0
      %981 = vmatpush2.msra.mxu0 0.0
      %982 = vmatprep.subr.mxu0 0.0
      %983 = vmatpush2.msra.mxu0 0.0
      %984 = vmatprep.subr.mxu0 0.0
      %985 = vmatpush2.msra.mxu0 0.0
      %986 = vmatprep.subr.mxu0 0.0
      %987 = vmatpush2.msra.mxu0 0.0
      %988 = vmatprep.subr.mxu0 0.0
      %989 = vmatpush2.msra.mxu0 0.0
      %990 = vmatprep.subr.mxu0 0.0
      %991 = vmatpush2.msra.mxu0 0.0
      %992 = vmatprep.subr.mxu0 0.0
      %993 = vmatpush2.msra.mxu0 0.0
      %994 = vmatprep.subr.mxu0 0.0
      %995 = vmatpush2.msra.mxu0 0.0
      %996 = vmatprep.subr.mxu0 0.0
      %997 = vmatpush2.msra.mxu0 0.0
      %998 = vmatprep.subr.mxu0 0.0
      %999 = vmatpush2.msra.mxu0 0.0
      %1000 = vmatprep.subr.mxu0 0.0
      %1001 = vmatpush2.msra.mxu0 0.0
      %1002 = vmatprep.subr.mxu0 0.0
      %1003 = vmatpush2.msra.mxu0 0.0
      %1004 = vmatprep.subr.mxu0 0.0
      %1005 = vmatpush2.msra.mxu0 0.0
      %1006 = vmatprep.subr.mxu0 0.0
      %1007 = vmatpush2.msra.mxu0 0.0
      %1008 = vmatprep.subr.mxu0 0.0
      %1009 = vmatpush2.msra.mxu0 0.0
      %1010 = vmatprep.mubr.f32.mxu0 0.0
      %v1011 = vand.u32 %v360, 4294901760
      %v1012 = vsub.f32 %v360, %v1011
      %v1013 = vand.u32 %v1012, 4294901760
      %1014 = vmatmul.mubr.f32.gmra.mxu0 %v1013
      %v1015 = vpop.f32.mrf.mxu0
      %v1016 = vadd.f32 %v853, %v1015
      %v1017 = vpop.f32.mrf.mxu0
      %1018 = vmatprep.mubr.f32.mxu0 0.0
      %v1019 = vand.u32 %v363, 4294901760
      %v1020 = vsub.f32 %v363, %v1019
      %v1021 = vand.u32 %v1020, 4294901760
      %1022 = vmatmul.mubr.f32.gmra.mxu0 %v1021
      %v1023 = vpop.f32.mrf.mxu0
      %v1024 = vadd.f32 %v860, %v1023
      %v1025 = vpop.f32.mrf.mxu0
      %1026 = vmatprep.mubr.f32.mxu0 0.0
      %v1027 = vand.u32 %v366, 4294901760
      %v1028 = vsub.f32 %v366, %v1027
      %v1029 = vand.u32 %v1028, 4294901760
      %1030 = vmatmul.mubr.f32.gmra.mxu0 %v1029
      %v1031 = vpop.f32.mrf.mxu0
      %v1032 = vadd.f32 %v867, %v1031
      %v1033 = vpop.f32.mrf.mxu0
      %1034 = vmatprep.mubr.f32.mxu0 0.0
      %v1035 = vand.u32 %v369, 4294901760
      %v1036 = vsub.f32 %v369, %v1035
      %v1037 = vand.u32 %v1036, 4294901760
      %1038 = vmatmul.mubr.f32.gmra.mxu0 %v1037
      %v1039 = vpop.f32.mrf.mxu0
      %v1040 = vadd.f32 %v874, %v1039
      %v1041 = vpop.f32.mrf.mxu0
      %1042 = vmatprep.mubr.f32.mxu0 0.0
      %v1043 = vand.u32 %v372, 4294901760
      %v1044 = vsub.f32 %v372, %v1043
      %v1045 = vand.u32 %v1044, 4294901760
      %1046 = vmatmul.mubr.f32.gmra.mxu0 %v1045
      %v1047 = vpop.f32.mrf.mxu0
      %v1048 = vadd.f32 %v881, %v1047
      %v1049 = vpop.f32.mrf.mxu0
      %1050 = vmatprep.mubr.f32.mxu0 0.0
      %v1051 = vand.u32 %v375, 4294901760
      %v1052 = vsub.f32 %v375, %v1051
      %v1053 = vand.u32 %v1052, 4294901760
      %1054 = vmatmul.mubr.f32.gmra.mxu0 %v1053
      %v1055 = vpop.f32.mrf.mxu0
      %v1056 = vadd.f32 %v888, %v1055
      %v1057 = vpop.f32.mrf.mxu0
      %1058 = vmatprep.mubr.f32.mxu0 0.0
      %v1059 = vand.u32 %v378, 4294901760
      %v1060 = vsub.f32 %v378, %v1059
      %v1061 = vand.u32 %v1060, 4294901760
      %1062 = vmatmul.mubr.f32.gmra.mxu0 %v1061
      %v1063 = vpop.f32.mrf.mxu0
      %v1064 = vadd.f32 %v895, %v1063
      %v1065 = vpop.f32.mrf.mxu0
      %1066 = vmatprep.mubr.f32.mxu0 0.0
      %v1067 = vand.u32 %v381, 4294901760
      %v1068 = vsub.f32 %v381, %v1067
      %v1069 = vand.u32 %v1068, 4294901760
      %1070 = vmatmul.mubr.f32.gmra.mxu0 %v1069
      %v1071 = vpop.f32.mrf.mxu0
      %v1072 = vadd.f32 %v902, %v1071
      %v1073 = vpop.f32.mrf.mxu0
      %1074 = vmatprep.mubr.f32.mxu0 0.0
      %v1075 = vand.u32 %v384, 4294901760
      %v1076 = vsub.f32 %v384, %v1075
      %v1077 = vand.u32 %v1076, 4294901760
      %1078 = vmatmul.mubr.f32.gmra.mxu0 %v1077
      %v1079 = vpop.f32.mrf.mxu0
      %v1080 = vadd.f32 %v909, %v1079
      %v1081 = vpop.f32.mrf.mxu0
      %1082 = vmatprep.mubr.f32.mxu0 0.0
      %v1083 = vand.u32 %v387, 4294901760
      %v1084 = vsub.f32 %v387, %v1083
      %v1085 = vand.u32 %v1084, 4294901760
      %1086 = vmatmul.mubr.f32.gmra.mxu0 %v1085
      %v1087 = vpop.f32.mrf.mxu0
      %v1088 = vadd.f32 %v916, %v1087
      %v1089 = vpop.f32.mrf.mxu0
      %1090 = vmatprep.mubr.f32.mxu0 0.0
      %v1091 = vand.u32 %v390, 4294901760
      %v1092 = vsub.f32 %v390, %v1091
      %v1093 = vand.u32 %v1092, 4294901760
      %1094 = vmatmul.mubr.f32.gmra.mxu0 %v1093
      %v1095 = vpop.f32.mrf.mxu0
      %v1096 = vadd.f32 %v923, %v1095
      %v1097 = vpop.f32.mrf.mxu0
      %1098 = vmatprep.mubr.f32.mxu0 0.0
      %v1099 = vand.u32 %v393, 4294901760
      %v1100 = vsub.f32 %v393, %v1099
      %v1101 = vand.u32 %v1100, 4294901760
      %1102 = vmatmul.mubr.f32.gmra.mxu0 %v1101
      %v1103 = vpop.f32.mrf.mxu0
      %v1104 = vadd.f32 %v930, %v1103
      %v1105 = vpop.f32.mrf.mxu0
      %1106 = vmatprep.mubr.f32.mxu0 0.0
      %v1107 = vand.u32 %v396, 4294901760
      %v1108 = vsub.f32 %v396, %v1107
      %v1109 = vand.u32 %v1108, 4294901760
      %1110 = vmatmul.mubr.f32.gmra.mxu0 %v1109
      %v1111 = vpop.f32.mrf.mxu0
      %v1112 = vadd.f32 %v937, %v1111
      %v1113 = vpop.f32.mrf.mxu0
      %1114 = vdwg.mxu0
      %1115 = vmatprep.subr.mxu0 0.0
      %1116 = vmatpush1.msra.mxu0 0.0
      %1117 = vmatprep.subr.mxu0 0.0
      %1118 = vmatpush1.msra.mxu0 0.0
      %1119 = vmatprep.subr.mxu0 0.0
      %1120 = vmatpush1.msra.mxu0 0.0
      %1121 = vmatprep.subr.mxu0 0.0
      %1122 = vmatpush1.msra.mxu0 0.0
      %1123 = vmatprep.subr.mxu0 0.0
      %1124 = vmatpush1.msra.mxu0 0.0
      %1125 = vmatprep.subr.mxu0 0.0
      %1126 = vmatpush1.msra.mxu0 0.0
      %1127 = vmatprep.subr.mxu0 0.0
      %1128 = vmatpush1.msra.mxu0 0.0
      %1129 = vmatprep.subr.mxu0 0.0
      %1130 = vmatpush1.msra.mxu0 0.0
      %1131 = vmatprep.subr.mxu0 0.0
      %1132 = vmatpush1.msra.mxu0 0.0
      %1133 = vmatprep.subr.mxu0 0.0
      %1134 = vmatpush1.msra.mxu0 0.0
      %1135 = vmatprep.subr.mxu0 0.0
      %v1136 = vand.u32 %v264, 4294901760
      %v1137 = vsub.f32 %v264, %v1136
      %v1138 = vand.u32 %v1137, 4294901760
      %1139 = vmatpush1.msra.mxu0 %v1138
      %1140 = vmatprep.subr.mxu0 0.0
      %v1141 = vand.u32 %v263, 4294901760
      %v1142 = vsub.f32 %v263, %v1141
      %v1143 = vand.u32 %v1142, 4294901760
      %1144 = vmatpush1.msra.mxu0 %v1143
      %1145 = vmatprep.subr.mxu0 0.0
      %v1146 = vand.u32 %v262, 4294901760
      %v1147 = vsub.f32 %v262, %v1146
      %v1148 = vand.u32 %v1147, 4294901760
      %1149 = vmatpush1.msra.mxu0 %v1148
      %1150 = vmatprep.subr.mxu0 0.0
      %v1151 = vand.u32 %v261, 4294901760
      %v1152 = vsub.f32 %v261, %v1151
      %v1153 = vand.u32 %v1152, 4294901760
      %1154 = vmatpush1.msra.mxu0 %v1153
      %1155 = vmatprep.subr.mxu0 0.0
      %v1156 = vand.u32 %v260, 4294901760
      %v1157 = vsub.f32 %v260, %v1156
      %v1158 = vand.u32 %v1157, 4294901760
      %1159 = vmatpush1.msra.mxu0 %v1158
      %1160 = vmatprep.subr.mxu0 0.0
      %v1161 = vand.u32 %v259, 4294901760
      %v1162 = vsub.f32 %v259, %v1161
      %v1163 = vand.u32 %v1162, 4294901760
      %1164 = vmatpush1.msra.mxu0 %v1163
      %1165 = vmatprep.subr.mxu0 0.0
      %1166 = vmatpush2.msra.mxu0 0.0
      %1167 = vmatprep.subr.mxu0 0.0
      %1168 = vmatpush2.msra.mxu0 0.0
      %1169 = vmatprep.subr.mxu0 0.0
      %1170 = vmatpush2.msra.mxu0 0.0
      %1171 = vmatprep.subr.mxu0 0.0
      %1172 = vmatpush2.msra.mxu0 0.0
      %1173 = vmatprep.subr.mxu0 0.0
      %1174 = vmatpush2.msra.mxu0 0.0
      %1175 = vmatprep.subr.mxu0 0.0
      %1176 = vmatpush2.msra.mxu0 0.0
      %1177 = vmatprep.subr.mxu0 0.0
      %1178 = vmatpush2.msra.mxu0 0.0
      %1179 = vmatprep.subr.mxu0 0.0
      %1180 = vmatpush2.msra.mxu0 0.0
      %1181 = vmatprep.subr.mxu0 0.0
      %1182 = vmatpush2.msra.mxu0 0.0
      %1183 = vmatprep.subr.mxu0 0.0
      %1184 = vmatpush2.msra.mxu0 0.0
      %1185 = vmatprep.subr.mxu0 0.0
      %1186 = vmatpush2.msra.mxu0 0.0
      %1187 = vmatprep.subr.mxu0 0.0
      %1188 = vmatpush2.msra.mxu0 0.0
      %1189 = vmatprep.subr.mxu0 0.0
      %1190 = vmatpush2.msra.mxu0 0.0
      %1191 = vmatprep.subr.mxu0 0.0
      %1192 = vmatpush2.msra.mxu0 0.0
      %1193 = vmatprep.subr.mxu0 0.0
      %1194 = vmatpush2.msra.mxu0 0.0
      %1195 = vmatprep.subr.mxu0 0.0
      %1196 = vmatpush2.msra.mxu0 0.0
      %1197 = vmatprep.mubr.f32.mxu0 0.0
      %v1198 = vand.u32 %v360, 4294901760
      %1199 = vmatmul.mubr.f32.gmra.mxu0 %v1198
      %v1200 = vpop.f32.mrf.mxu0
      %v1201 = vadd.f32 %v1016, %v1200
      %v1202 = vpop.f32.mrf.mxu0
      %1203 = vmatprep.mubr.f32.mxu0 0.0
      %v1204 = vand.u32 %v363, 4294901760
      %1205 = vmatmul.mubr.f32.gmra.mxu0 %v1204
      %v1206 = vpop.f32.mrf.mxu0
      %v1207 = vadd.f32 %v1024, %v1206
      %v1208 = vpop.f32.mrf.mxu0
      %1209 = vmatprep.mubr.f32.mxu0 0.0
      %v1210 = vand.u32 %v366, 4294901760
      %1211 = vmatmul.mubr.f32.gmra.mxu0 %v1210
      %v1212 = vpop.f32.mrf.mxu0
      %v1213 = vadd.f32 %v1032, %v1212
      %v1214 = vpop.f32.mrf.mxu0
      %1215 = vmatprep.mubr.f32.mxu0 0.0
      %v1216 = vand.u32 %v369, 4294901760
      %1217 = vmatmul.mubr.f32.gmra.mxu0 %v1216
      %v1218 = vpop.f32.mrf.mxu0
      %v1219 = vadd.f32 %v1040, %v1218
      %v1220 = vpop.f32.mrf.mxu0
      %1221 = vmatprep.mubr.f32.mxu0 0.0
      %v1222 = vand.u32 %v372, 4294901760
      %1223 = vmatmul.mubr.f32.gmra.mxu0 %v1222
      %v1224 = vpop.f32.mrf.mxu0
      %v1225 = vadd.f32 %v1048, %v1224
      %v1226 = vpop.f32.mrf.mxu0
      %1227 = vmatprep.mubr.f32.mxu0 0.0
      %v1228 = vand.u32 %v375, 4294901760
      %1229 = vmatmul.mubr.f32.gmra.mxu0 %v1228
      %v1230 = vpop.f32.mrf.mxu0
      %v1231 = vadd.f32 %v1056, %v1230
      %v1232 = vpop.f32.mrf.mxu0
      %1233 = vmatprep.mubr.f32.mxu0 0.0
      %v1234 = vand.u32 %v378, 4294901760
      %1235 = vmatmul.mubr.f32.gmra.mxu0 %v1234
      %v1236 = vpop.f32.mrf.mxu0
      %v1237 = vadd.f32 %v1064, %v1236
      %v1238 = vpop.f32.mrf.mxu0
      %1239 = vmatprep.mubr.f32.mxu0 0.0
      %v1240 = vand.u32 %v381, 4294901760
      %1241 = vmatmul.mubr.f32.gmra.mxu0 %v1240
      %v1242 = vpop.f32.mrf.mxu0
      %v1243 = vadd.f32 %v1072, %v1242
      %v1244 = vpop.f32.mrf.mxu0
      %1245 = vmatprep.mubr.f32.mxu0 0.0
      %v1246 = vand.u32 %v384, 4294901760
      %1247 = vmatmul.mubr.f32.gmra.mxu0 %v1246
      %v1248 = vpop.f32.mrf.mxu0
      %v1249 = vadd.f32 %v1080, %v1248
      %v1250 = vpop.f32.mrf.mxu0
      %1251 = vmatprep.mubr.f32.mxu0 0.0
      %v1252 = vand.u32 %v387, 4294901760
      %1253 = vmatmul.mubr.f32.gmra.mxu0 %v1252
      %v1254 = vpop.f32.mrf.mxu0
      %v1255 = vadd.f32 %v1088, %v1254
      %v1256 = vpop.f32.mrf.mxu0
      %1257 = vmatprep.mubr.f32.mxu0 0.0
      %v1258 = vand.u32 %v390, 4294901760
      %1259 = vmatmul.mubr.f32.gmra.mxu0 %v1258
      %v1260 = vpop.f32.mrf.mxu0
      %v1261 = vadd.f32 %v1096, %v1260
      %v1262 = vpop.f32.mrf.mxu0
      %1263 = vmatprep.mubr.f32.mxu0 0.0
      %v1264 = vand.u32 %v393, 4294901760
      %1265 = vmatmul.mubr.f32.gmra.mxu0 %v1264
      %v1266 = vpop.f32.mrf.mxu0
      %v1267 = vadd.f32 %v1104, %v1266
      %v1268 = vpop.f32.mrf.mxu0
      %1269 = vmatprep.mubr.f32.mxu0 0.0
      %v1270 = vand.u32 %v396, 4294901760
      %1271 = vmatmul.mubr.f32.gmra.mxu0 %v1270
      %v1272 = vpop.f32.mrf.mxu0
      %v1273 = vadd.f32 %v1112, %v1272
      %v1274 = vpop.f32.mrf.mxu0
      %1275 = vdwg.mxu0
      %1276 = vmatprep.subr.mxu0 0.0
      %1277 = vmatpush1.msra.mxu0 0.0
      %1278 = vmatprep.subr.mxu0 0.0
      %1279 = vmatpush1.msra.mxu0 0.0
      %1280 = vmatprep.subr.mxu0 0.0
      %1281 = vmatpush1.msra.mxu0 0.0
      %1282 = vmatprep.subr.mxu0 0.0
      %1283 = vmatpush1.msra.mxu0 0.0
      %1284 = vmatprep.subr.mxu0 0.0
      %1285 = vmatpush1.msra.mxu0 0.0
      %1286 = vmatprep.subr.mxu0 0.0
      %1287 = vmatpush1.msra.mxu0 0.0
      %1288 = vmatprep.subr.mxu0 0.0
      %1289 = vmatpush1.msra.mxu0 0.0
      %1290 = vmatprep.subr.mxu0 0.0
      %1291 = vmatpush1.msra.mxu0 0.0
      %1292 = vmatprep.subr.mxu0 0.0
      %1293 = vmatpush1.msra.mxu0 0.0
      %1294 = vmatprep.subr.mxu0 0.0
      %1295 = vmatpush1.msra.mxu0 0.0
      %1296 = vmatprep.subr.mxu0 0.0
      %v1297 = vand.u32 %v264, 4294901760
      %1298 = vmatpush1.msra.mxu0 %v1297
      %1299 = vmatprep.subr.mxu0 0.0
      %v1300 = vand.u32 %v263, 4294901760
      %1301 = vmatpush1.msra.mxu0 %v1300
      %1302 = vmatprep.subr.mxu0 0.0
      %v1303 = vand.u32 %v262, 4294901760
      %1304 = vmatpush1.msra.mxu0 %v1303
      %1305 = vmatprep.subr.mxu0 0.0
      %v1306 = vand.u32 %v261, 4294901760
      %1307 = vmatpush1.msra.mxu0 %v1306
      %1308 = vmatprep.subr.mxu0 0.0
      %v1309 = vand.u32 %v260, 4294901760
      %1310 = vmatpush1.msra.mxu0 %v1309
      %1311 = vmatprep.subr.mxu0 0.0
      %v1312 = vand.u32 %v259, 4294901760
      %1313 = vmatpush1.msra.mxu0 %v1312
      %1314 = vmatprep.subr.mxu0 0.0
      %1315 = vmatpush2.msra.mxu0 0.0
      %1316 = vmatprep.subr.mxu0 0.0
      %1317 = vmatpush2.msra.mxu0 0.0
      %1318 = vmatprep.subr.mxu0 0.0
      %1319 = vmatpush2.msra.mxu0 0.0
      %1320 = vmatprep.subr.mxu0 0.0
      %1321 = vmatpush2.msra.mxu0 0.0
      %1322 = vmatprep.subr.mxu0 0.0
      %1323 = vmatpush2.msra.mxu0 0.0
      %1324 = vmatprep.subr.mxu0 0.0
      %1325 = vmatpush2.msra.mxu0 0.0
      %1326 = vmatprep.subr.mxu0 0.0
      %1327 = vmatpush2.msra.mxu0 0.0
      %1328 = vmatprep.subr.mxu0 0.0
      %1329 = vmatpush2.msra.mxu0 0.0
      %1330 = vmatprep.subr.mxu0 0.0
      %1331 = vmatpush2.msra.mxu0 0.0
      %1332 = vmatprep.subr.mxu0 0.0
      %1333 = vmatpush2.msra.mxu0 0.0
      %1334 = vmatprep.subr.mxu0 0.0
      %1335 = vmatpush2.msra.mxu0 0.0
      %1336 = vmatprep.subr.mxu0 0.0
      %1337 = vmatpush2.msra.mxu0 0.0
      %1338 = vmatprep.subr.mxu0 0.0
      %1339 = vmatpush2.msra.mxu0 0.0
      %1340 = vmatprep.subr.mxu0 0.0
      %1341 = vmatpush2.msra.mxu0 0.0
      %1342 = vmatprep.subr.mxu0 0.0
      %1343 = vmatpush2.msra.mxu0 0.0
      %1344 = vmatprep.subr.mxu0 0.0
      %1345 = vmatpush2.msra.mxu0 0.0
      %1346 = vmatprep.mubr.f32.mxu0 0.0
      %v1347 = vand.u32 %v360, 4294901760
      %1348 = vmatmul.mubr.f32.gmra.mxu0 %v1347
      %v1349 = vpop.f32.mrf.mxu0
      %v1350 = vadd.f32 %v1201, %v1349
      %v1351 = vpop.f32.mrf.mxu0
      %1352 = vmatprep.mubr.f32.mxu0 0.0
      %v1353 = vand.u32 %v363, 4294901760
      %1354 = vmatmul.mubr.f32.gmra.mxu0 %v1353
      %v1355 = vpop.f32.mrf.mxu0
      %v1356 = vadd.f32 %v1207, %v1355
      %v1357 = vpop.f32.mrf.mxu0
      %1358 = vmatprep.mubr.f32.mxu0 0.0
      %v1359 = vand.u32 %v366, 4294901760
      %1360 = vmatmul.mubr.f32.gmra.mxu0 %v1359
      %v1361 = vpop.f32.mrf.mxu0
      %v1362 = vadd.f32 %v1213, %v1361
      %v1363 = vpop.f32.mrf.mxu0
      %1364 = vmatprep.mubr.f32.mxu0 0.0
      %v1365 = vand.u32 %v369, 4294901760
      %1366 = vmatmul.mubr.f32.gmra.mxu0 %v1365
      %v1367 = vpop.f32.mrf.mxu0
      %v1368 = vadd.f32 %v1219, %v1367
      %v1369 = vpop.f32.mrf.mxu0
      %1370 = vmatprep.mubr.f32.mxu0 0.0
      %v1371 = vand.u32 %v372, 4294901760
      %1372 = vmatmul.mubr.f32.gmra.mxu0 %v1371
      %v1373 = vpop.f32.mrf.mxu0
      %v1374 = vadd.f32 %v1225, %v1373
      %v1375 = vpop.f32.mrf.mxu0
      %1376 = vmatprep.mubr.f32.mxu0 0.0
      %v1377 = vand.u32 %v375, 4294901760
      %1378 = vmatmul.mubr.f32.gmra.mxu0 %v1377
      %v1379 = vpop.f32.mrf.mxu0
      %v1380 = vadd.f32 %v1231, %v1379
      %v1381 = vpop.f32.mrf.mxu0
      %1382 = vmatprep.mubr.f32.mxu0 0.0
      %v1383 = vand.u32 %v378, 4294901760
      %1384 = vmatmul.mubr.f32.gmra.mxu0 %v1383
      %v1385 = vpop.f32.mrf.mxu0
      %v1386 = vadd.f32 %v1237, %v1385
      %v1387 = vpop.f32.mrf.mxu0
      %1388 = vmatprep.mubr.f32.mxu0 0.0
      %v1389 = vand.u32 %v381, 4294901760
      %1390 = vmatmul.mubr.f32.gmra.mxu0 %v1389
      %v1391 = vpop.f32.mrf.mxu0
      %v1392 = vadd.f32 %v1243, %v1391
      %v1393 = vpop.f32.mrf.mxu0
      %1394 = vmatprep.mubr.f32.mxu0 0.0
      %v1395 = vand.u32 %v384, 4294901760
      %1396 = vmatmul.mubr.f32.gmra.mxu0 %v1395
      %v1397 = vpop.f32.mrf.mxu0
      %v1398 = vadd.f32 %v1249, %v1397
      %v1399 = vpop.f32.mrf.mxu0
      %1400 = vmatprep.mubr.f32.mxu0 0.0
      %v1401 = vand.u32 %v387, 4294901760
      %1402 = vmatmul.mubr.f32.gmra.mxu0 %v1401
      %v1403 = vpop.f32.mrf.mxu0
      %v1404 = vadd.f32 %v1255, %v1403
      %v1405 = vpop.f32.mrf.mxu0
      %1406 = vmatprep.mubr.f32.mxu0 0.0
      %v1407 = vand.u32 %v390, 4294901760
      %1408 = vmatmul.mubr.f32.gmra.mxu0 %v1407
      %v1409 = vpop.f32.mrf.mxu0
      %v1410 = vadd.f32 %v1261, %v1409
      %v1411 = vpop.f32.mrf.mxu0
      %1412 = vmatprep.mubr.f32.mxu0 0.0
      %v1413 = vand.u32 %v393, 4294901760
      %1414 = vmatmul.mubr.f32.gmra.mxu0 %v1413
      %v1415 = vpop.f32.mrf.mxu0
      %v1416 = vadd.f32 %v1267, %v1415
      %v1417 = vpop.f32.mrf.mxu0
      %1418 = vmatprep.mubr.f32.mxu0 0.0
      %v1419 = vand.u32 %v396, 4294901760
      %1420 = vmatmul.mubr.f32.gmra.mxu0 %v1419
      %v1421 = vpop.f32.mrf.mxu0
      %v1422 = vadd.f32 %v1273, %v1421
      %v1423 = vpop.f32.mrf.mxu0
      %1424 = vdwg.mxu0
      %vm1425 = vcmask 416768
      %1426 = vst.msk [vmem:[%s197] sm:$0xff] %vm1425, %v1350
      %1427 = vst.msk [vmem:[%s197 + $0x8] sm:$0xff] %vm1425, %v1356
      %1428 = vst.msk [vmem:[%s197 + $0x10] sm:$0xff] %vm1425, %v1362
      %1429 = vst.msk [vmem:[%s197 + $0x18] sm:$0xff] %vm1425, %v1368
      %1430 = vst.msk [vmem:[%s197 + $0x20] sm:$0xff] %vm1425, %v1374
      %1431 = vst.msk [vmem:[%s197 + $0x28] sm:$0xff] %vm1425, %v1380
      %1432 = vst.msk [vmem:[%s197 + $0x30] sm:$0xff] %vm1425, %v1386
      %1433 = vst.msk [vmem:[%s197 + $0x38] sm:$0xff] %vm1425, %v1392
      %1434 = vst.msk [vmem:[%s197 + $0x40] sm:$0xff] %vm1425, %v1398
      %1435 = vst.msk [vmem:[%s197 + $0x48] sm:$0xff] %vm1425, %v1404
      %1436 = vst.msk [vmem:[%s197 + $0x50] sm:$0xff] %vm1425, %v1410
      %1437 = vst.msk [vmem:[%s197 + $0x58] sm:$0xff] %vm1425, %v1416
      %vm1438 = vcmask 412672
      %1439 = vst.msk [vmem:[%s197 + $0x60] sm:$0xf] %vm1438, %v1422
      %s1440 = scalar_lea.vmem %s197, 104
      %1441 = vst.msk [vmem:[%s1440] sm:$0xff] %vm1425, 0.0
      %1442 = vst.msk [vmem:[%s1440 + $0x8] sm:$0xff] %vm1425, 0.0
      %1443 = vst.msk [vmem:[%s1440 + $0x10] sm:$0xff] %vm1425, 0.0
      %1444 = vst.msk [vmem:[%s1440 + $0x18] sm:$0xff] %vm1425, 0.0
      %1445 = vst.msk [vmem:[%s1440 + $0x20] sm:$0xff] %vm1425, 0.0
      %1446 = vst.msk [vmem:[%s1440 + $0x28] sm:$0xff] %vm1425, 0.0
      %1447 = vst.msk [vmem:[%s1440 + $0x30] sm:$0xff] %vm1425, 0.0
      %1448 = vst.msk [vmem:[%s1440 + $0x38] sm:$0xff] %vm1425, 0.0
      %1449 = vst.msk [vmem:[%s1440 + $0x40] sm:$0xff] %vm1425, 0.0
      %1450 = vst.msk [vmem:[%s1440 + $0x48] sm:$0xff] %vm1425, 0.0
      %1451 = vst.msk [vmem:[%s1440 + $0x50] sm:$0xff] %vm1425, 0.0
      %1452 = vst.msk [vmem:[%s1440 + $0x58] sm:$0xff] %vm1425, 0.0
      %1453 = vst.msk [vmem:[%s1440 + $0x60] sm:$0xf] %vm1438, 0.0
      %p1454 = scmp.lt.s32.totalorder %s15, 9
      %s1455 = scalar_select %p1454, %s15, 9
      %s1456 = smul.addr %s1455, 26
      %s1457 = smul.addr %s1456, 8
      %s1458 = scalar_lea.vmem %s4, %s1457
      // Predicated region
      $region37: #{custom_transform.1} parent=35 // pred_check
        %p1459 = pneg %p122
      $region38: #{custom_transform.1} parent=35 // pred_check_branch
        %1461 = sbr.rel (%p1459) target = $region40
      $region39: #{custom_transform.1} parent=35 // pred_region
        _
      $region40: #{custom_transform.1} parent=35 // pred_fallthru
        _
    $region36: #{custom_transform.1} parent=5 // pred_fallthru
      _
    %p1462 = scmp.le.s32.totalorder 2, %s10
    // Predicated region
    $region41: #{custom_transform.1} parent=5 // pred_check
      %p1463 = pneg %p1462
    $region42: #{custom_transform.1} parent=5 // pred_check_branch
      %1465 = sbr.rel (%p1463) target = $region44
    $region43: #{custom_transform.1} parent=5 // pred_region
      %s1466 = ssub.s32 %s10, 2
      // Predicated region
      $region45: #{custom_transform.1} parent=43 // pred_check
        %p1467 = pneg %p128
      $region46: #{custom_transform.1} parent=43 // pred_check_branch
        %1469 = sbr.rel (%p1467) target = $region48
      $region47: #{custom_transform.1} parent=43 // pred_region
        %p1470 = scmp.lt.s32.totalorder %s16, 9
        %s1471 = scalar_select %p1470, %s16, 9
        %s1472 = smul.addr %s1471, 26
        %s1473 = smul.addr %s1472, 8
        %s1474 = scalar_lea.vmem %s4, %s1473
      $region48: #{custom_transform.1} parent=43 // pred_fallthru
        _
    $region44: #{custom_transform.1} parent=5 // pred_fallthru
      _
  $region6: #{custom_transform.1} parent=0 // loop_footer
    %s14 = sadd.s32 1, %s10
  $region7: #{custom_transform.1} parent=0 // loop_footer_branch
    %9 = sbr.rel target = $region3
  $region8: #{custom_transform.1} parent=0 // loop_exit
    _

</llo_original>
